<compile_context>
chip_gen: v7x
topology: tpu7x:2x2x1
jax: 0.10.0
libtpu: 0.0.40
codegen_flags: <defaults>
</compile_context>

<pallas_src>
from functools import partial

import jax
import jax.numpy as jnp
from jax.experimental import pallas as pl
from jax.experimental.pallas import tpu as pltpu

EPS = 1e-6  # TODO(synk): inner TransformerBlock LayerNorm eps defaults to 1e-5 in
            # PyTorch unless the (unshown) block overrides it; 1e-6 matches the
            # explicit fusion_norm eps and is used everywhere here.

COMPUTE_DTYPE = jnp.bfloat16  # MXU input dtype; accumulation stays f32.


def _layernorm(x, w, b):
    x = x.astype(jnp.float32)
    mu = jnp.mean(x, axis=-1, keepdims=True)
    var = jnp.mean((x - mu) ** 2, axis=-1, keepdims=True)
    return (x - mu) * jax.lax.rsqrt(var + EPS) * w + b


def _gelu(x, approximate):
    if approximate:
        # tanh approximation -> EUP slot (perf option; slightly different
        # numerics than nn.GELU()'s exact erf).
        return jax.nn.gelu(x, approximate=True)
    # PyTorch nn.GELU() default: exact erf formulation.
    return 0.5 * x * (1.0 + jax.lax.erf(x * 0.7071067811865476))


def fusion_kernel(
    x_ref, pos_ref,
    n1w_ref, n1b_ref,
    qkvw_ref, qkvb_ref,
    pw_ref, pb_ref,
    n2w_ref, n2b_ref,
    fc1w_ref, fc1b_ref, fc2w_ref, fc2b_ref,
    fnw_ref, fnb_ref,
    out_ref,
    x_acc,
    *, num_heads, bt, seq, dim, approx_gelu,
):
    l = pl.program_id(1)
    n_layers = pl.num_programs(1)
    hd = dim // num_heads
    rows = bt * seq
    cdt = COMPUTE_DTYPE

    # ---- first layer step: materialize x + pos_embed into the f32 residual scratch
    @pl.when(l == 0)
    def _init():
        x0 = x_ref[...].astype(jnp.float32) + pos_ref[...].astype(jnp.float32)  # (BT,N,D)
        x_acc[...] = x0.reshape(rows, dim)

    x = x_acc[...]                                       # (BT*N, D) f32 residual stream

    # ===================== multi-head self-attention =====================
    n1w = n1w_ref[0].astype(jnp.float32)                 # (1, D) -- loaded once per layer
    n1b = n1b_ref[0].astype(jnp.float32)
    h = _layernorm(x, n1w, n1b).astype(cdt)              # (R, D) bf16 MXU input

    # Fused QKV: single dense (R,D)@(D,3D) MXU dot.  Softmax scale was folded
    # into the q columns of the weight/bias at prep time.
    qkv = (jnp.dot(h, qkvw_ref[0], preferred_element_type=jnp.float32)
           + qkvb_ref[0].astype(jnp.float32))            # (R, 3D) f32

    head_out = []
    for hh in range(num_heads):                          # per-head lane slices (hd-multiple offsets)
        q = qkv[:, hh * hd:(hh + 1) * hd].astype(cdt).reshape(bt, seq, hd)
        k = qkv[:, dim + hh * hd: dim + (hh + 1) * hd].astype(cdt).reshape(bt, seq, hd)
        v = qkv[:, 2 * dim + hh * hd: 2 * dim + (hh + 1) * hd].astype(cdt).reshape(bt, seq, hd)
        s = jnp.einsum('bne,bme->bnm', q, k,
                       preferred_element_type=jnp.float32)        # (BT, N, N) f32
        s = s - jnp.max(s, axis=-1, keepdims=True)
        p = jnp.exp(s)
        p = p * pl.reciprocal(jnp.sum(p, axis=-1, keepdims=True), approx=True)
        o = jnp.einsum('bnm,bme->bne', p.astype(cdt), v,
                       preferred_element_type=jnp.float32)        # (BT, N, hd) f32
        head_out.append(o.reshape(rows, hd))

    # Concatenate head outputs along lanes, then ONE dense (R,D)@(D,D) projection.
    o_all = jnp.concatenate(head_out, axis=-1).astype(cdt)        # (R, D)
    attn = (jnp.dot(o_all, pw_ref[0], preferred_element_type=jnp.float32)
            + pb_ref[0].astype(jnp.float32))
    x = x + attn                                          # drop_path/dropout = identity (eval)

    # ================================ MLP ================================
    n2w = n2w_ref[0].astype(jnp.float32)
    n2b = n2b_ref[0].astype(jnp.float32)
    m = _layernorm(x, n2w, n2b).astype(cdt)
    m = (jnp.dot(m, fc1w_ref[0], preferred_element_type=jnp.float32)
         + fc1b_ref[0].astype(jnp.float32))
    m = _gelu(m, approx_gelu).astype(cdt)
    m = (jnp.dot(m, fc2w_ref[0], preferred_element_type=jnp.float32)
         + fc2b_ref[0].astype(jnp.float32))
    x = x + m

    x_acc[...] = x

    # ---- last layer step: final LayerNorm + mean over patches
    @pl.when(l == n_layers - 1)
    def _final():
        fnw = fnw_ref[...].astype(jnp.float32)            # (1, D)
        fnb = fnb_ref[...].astype(jnp.float32)
        xf = _layernorm(x, fnw, fnb)                      # (R, D)
        out_ref[...] = jnp.mean(xf.reshape(bt, seq, dim), axis=1).astype(out_ref.dtype)


def prepare_params(params, *, num_heads):
    """One-time host-side re-layout / dtype cast / scale folding.

    Hoisted out of the per-call forward (the transposes/casts touch all L
    layers of weights in HBM; doing it per forward can rival the kernel).
    The softmax scale is folded into the q columns of the fused qkv weight
    and bias here, so the kernel never multiplies q by the scale."""
    L, D, _ = params['qkvw'].shape
    Dh = params['fc1w'].shape[-1]
    hd = D // num_heads
    scale = float(hd) ** -0.5
    f32, cdt = jnp.float32, COMPUTE_DTYPE

    # column layout of the fused qkv output is [q(0:D) | k(D:2D) | v(2D:3D)],
    # heads contiguous (hd columns each) inside every segment.
    col_scale = jnp.concatenate([jnp.full((D,), scale, f32), jnp.ones((2 * D,), f32)])
    qkvw = (params['qkvw'].astype(f32) * col_scale).astype(cdt)          # (L, D, 3D) bf16
    qkvb = (params['qkvb'].astype(f32) * col_scale).reshape(L, 1, 3 * D)  # (L, 1, 3D) f32

    return dict(
        pos=params['pos'].astype(f32),                                    # (1, N, D)
        n1w=params['n1w'].astype(f32).reshape(L, 1, D),
        n1b=params['n1b'].astype(f32).reshape(L, 1, D),
        qkvw=qkvw, qkvb=qkvb,
        projw=params['projw'].astype(cdt),                                # (L, D, D) bf16
        projb=params['projb'].astype(f32).reshape(L, 1, D),
        n2w=params['n2w'].astype(f32).reshape(L, 1, D),
        n2b=params['n2b'].astype(f32).reshape(L, 1, D),
        fc1w=params['fc1w'].astype(cdt),                                  # (L, D, Dh) bf16
        fc1b=params['fc1b'].astype(f32).reshape(L, 1, Dh),
        fc2w=params['fc2w'].astype(cdt),                                  # (L, Dh, D) bf16
        fc2b=params['fc2b'].astype(f32).reshape(L, 1, D),
        fnw=params['fnw'].astype(f32).reshape(1, D),
        fnb=params['fnb'].astype(f32).reshape(1, D),
    )


def fusion_block_forward(x, prep, *, num_layers, num_heads,
                         batch_tile=None, approx_gelu=False):
    B, N, D = x.shape
    L = num_layers
    # BT defaults to the whole batch so per-layer weights stream from HBM
    # exactly once per forward.  For very large B, pick BT so BT*N stays above
    # the compute-bound row floor and within the per-generation VMEM budget.
    BT = B if batch_tile is None else batch_tile
    assert B % BT == 0, "batch must be divisible by batch_tile"

    kern_inputs = [
        x, prep['pos'],
        prep['n1w'], prep['n1b'],
        prep['qkvw'], prep['qkvb'],
        prep['projw'], prep['projb'],
        prep['n2w'], prep['n2b'],
        prep['fc1w'], prep['fc1b'], prep['fc2w'], prep['fc2b'],
        prep['fnw'], prep['fnb'],
    ]

    def layer_spec(arr):   # streamed per layer: block index follows grid axis 1
        nd = arr.ndim
        return pl.BlockSpec((1,) + arr.shape[1:],
                            lambda b, l, nd=nd: (l,) + (0,) * (nd - 1))

    def const_spec(arr):   # constant across the whole grid
        nd = arr.ndim
        return pl.BlockSpec(arr.shape, lambda b, l, nd=nd: (0,) * nd)

    in_specs = [pl.BlockSpec((BT, N, D), lambda b, l: (b, 0, 0)),   # x (one batch tile)
                const_spec(kern_inputs[1])]                          # pos embed
    for arr in kern_inputs[2:14]:                                    # per-layer weights
        in_specs.append(layer_spec(arr))
    for arr in kern_inputs[14:]:                                     # final LN
        in_specs.append(const_spec(arr))

    return pl.pallas_call(
        partial(fusion_kernel, num_heads=num_heads, bt=BT, seq=N, dim=D,
                approx_gelu=approx_gelu),
        out_shape=jax.ShapeDtypeStruct((B, D), x.dtype),
        grid=(B // BT, L),
        in_specs=in_specs,
        out_specs=pl.BlockSpec((BT, D), lambda b, l: (b, 0)),
        scratch_shapes=[pltpu.VMEM((BT * N, D), jnp.float32)],       # residual stream
        compiler_params=pltpu.CompilerParams(
            # batch tiles split across TensorCores; layer axis carries the
            # residual-stream accumulator -> "arbitrary".
            dimension_semantics=("parallel", "arbitrary"),
            # Explicit scoped-VMEM limit: above the 16/32 MiB defaults on
            # v5e/v6e, <= physical on every generation (v7x has 64 MiB total).
            # Re-derive per generation for realistic D / mlp_ratio sizes.
            vmem_limit_bytes=64 * 1024 * 1024,
        ),
    )(*kern_inputs)


def init_params(key, num_layers, total_patches, embed_dim, mlp_ratio):
    L, N, D = num_layers, total_patches, embed_dim
    Dh = D * mlp_ratio
    ks = jax.random.split(key, 12)
    f32, bf16 = jnp.float32, COMPUTE_DTYPE
    nrm = lambda k, s, sd=0.02: jax.random.normal(k, s, f32) * sd
    return dict(
        pos=nrm(ks[0], (1, N, D)),                                  # trunc_normal std=0.02
        n1w=1.0 + 0.1 * jax.random.normal(ks[1], (L, D), f32),
        n1b=0.05 * jax.random.normal(ks[2], (L, D), f32),
        qkvw=nrm(ks[3], (L, D, 3 * D)).astype(bf16),                # bf16 MXU weights
        qkvb=0.02 * jax.random.normal(ks[4], (L, 3 * D), f32),
        projw=nrm(ks[5], (L, D, D)).astype(bf16),
        projb=0.02 * jax.random.normal(ks[6], (L, D), f32),
        n2w=1.0 + 0.1 * jax.random.normal(ks[7], (L, D), f32),
        n2b=0.05 * jax.random.normal(ks[8], (L, D), f32),
        fc1w=nrm(ks[9], (L, D, Dh)).astype(bf16),
        fc1b=0.02 * jax.random.normal(ks[10], (L, Dh), f32),
        fc2w=nrm(ks[11], (L, Dh, D)).astype(bf16),
        fc2b=jnp.zeros((L, D), f32),
        fnw=jnp.ones((1, D), f32),
        fnb=jnp.zeros((1, D), f32),
    )


def fusion_block_reference(x, params, *, num_layers, num_heads):
    """Plain-JAX reference mirroring the PyTorch forward (eval mode).

    Matmul inputs are cast to COMPUTE_DTYPE (bf16) with f32 accumulation --
    the same numerics policy as the kernel -- so the comparison is tight."""
    B, N, D = x.shape
    H = num_heads
    hd = D // H
    f32, cdt = jnp.float32, COMPUTE_DTYPE

    def mm(a, b):
        return jnp.dot(a.astype(cdt), b.astype(cdt), preferred_element_type=f32)

    x = x.astype(f32) + params['pos'].astype(f32)
    for l in range(num_layers):
        h = _layernorm(x, params['n1w'][l].astype(f32), params['n1b'][l].astype(f32))
        qkv = mm(h.reshape(B * N, D), params['qkvw'][l]) + params['qkvb'][l].astype(f32)
        qkv = qkv.reshape(B, N, 3, H, hd).transpose(2, 0, 3, 1, 4)   # (3, B, H, N, hd)
        q = qkv[0] * (float(hd) ** -0.5)
        k, v = qkv[1], qkv[2]
        att = jnp.einsum('bhne,bhme->bhnm', q.astype(cdt), k.astype(cdt),
                         preferred_element_type=f32)
        att = jax.nn.softmax(att, axis=-1)
        o = jnp.einsum('bhnm,bhme->bhne', att.astype(cdt), v.astype(cdt),
                       preferred_element_type=f32)
        o = o.transpose(0, 2, 1, 3).reshape(B * N, D)
        x = x + (mm(o, params['projw'][l])
                 + params['projb'][l].astype(f32)).reshape(B, N, D)
        h = _layernorm(x, params['n2w'][l].astype(f32), params['n2b'][l].astype(f32))
        m = mm(h.reshape(B * N, D), params['fc1w'][l]) + params['fc1b'][l].astype(f32)
        m = _gelu(m, approximate=False)
        m = mm(m, params['fc2w'][l]) + params['fc2b'][l].astype(f32)
        x = x + m.reshape(B, N, D)
    x = _layernorm(x, params['fnw'][0].astype(f32), params['fnb'][0].astype(f32))
    return x.mean(axis=1)


if __name__ == "__main__":
    # small, module-consistent shapes
    B, N, D = 2, 8, 32          # batch, total_patches, embed_dim
    num_layers = 2              # fusion_layer_num
    num_heads = 4               # fusion_num_heads (must divide embed_dim)
    mlp_ratio = 1               # fusion_mlp_ratio

    key = jax.random.PRNGKey(0)
    kx, kp = jax.random.split(key)
    x = jax.random.normal(kx, (B, N, D), jnp.float32)
    params = init_params(kp, num_layers, N, D, mlp_ratio)

    prep = prepare_params(params, num_heads=num_heads)   # one-time weight prep
    out = fusion_block_forward(x, prep, num_layers=num_layers, num_heads=num_heads)
    out = jax.block_until_ready(out)
    assert out.shape == (B, D), out.shape

    ref = fusion_block_reference(x, params, num_layers=num_layers, num_heads=num_heads)
    err = float(jnp.max(jnp.abs(out - ref)))
    assert jnp.allclose(out, ref, atol=1e-2, rtol=1e-2), f"max abs diff = {err}"

    print("KERNEL_OK")
</pallas_src>

<mosaic_0001>
module attributes {stable_mosaic.version = 11 : i64} {
  func.func @fusion_kernel(%arg0: i32, %arg1: i32, %arg2: memref<2x8x32xf32, #tpu.memory_space<vmem>>, %arg3: memref<1x8x32xf32, #tpu.memory_space<vmem>>, %arg4: memref<1x1x32xf32, #tpu.memory_space<vmem>>, %arg5: memref<1x1x32xf32, #tpu.memory_space<vmem>>, %arg6: memref<1x32x96xbf16, #tpu.memory_space<vmem>>, %arg7: memref<1x1x96xf32, #tpu.memory_space<vmem>>, %arg8: memref<1x32x32xbf16, #tpu.memory_space<vmem>>, %arg9: memref<1x1x32xf32, #tpu.memory_space<vmem>>, %arg10: memref<1x1x32xf32, #tpu.memory_space<vmem>>, %arg11: memref<1x1x32xf32, #tpu.memory_space<vmem>>, %arg12: memref<1x32x32xbf16, #tpu.memory_space<vmem>>, %arg13: memref<1x1x32xf32, #tpu.memory_space<vmem>>, %arg14: memref<1x32x32xbf16, #tpu.memory_space<vmem>>, %arg15: memref<1x1x32xf32, #tpu.memory_space<vmem>>, %arg16: memref<1x32xf32, #tpu.memory_space<vmem>>, %arg17: memref<1x32xf32, #tpu.memory_space<vmem>>, %arg18: memref<2x32xf32, #tpu.memory_space<vmem>>, %arg19: memref<16x32xf32, #tpu.memory_space<vmem>>) attributes {dimension_semantics = [#tpu.dimension_semantics<parallel>, #tpu.dimension_semantics<arbitrary>], iteration_bounds = array<i64: 1, 2>, scalar_prefetch = 0 : i64, scratch_operands = 1 : i64, tpu.core_type = #tpu.core_type<tc>, window_params = [{transform_indices = @transform_0, window_bounds = array<i64: 2, 8, 32>}, {pipeline_mode = #tpu.pipeline_mode<synchronous>, transform_indices = @transform_1, window_bounds = array<i64: 1, 8, 32>}, {transform_indices = @transform_2, window_bounds = array<i64: 1, 1, 32>}, {transform_indices = @transform_3, window_bounds = array<i64: 1, 1, 32>}, {transform_indices = @transform_4, window_bounds = array<i64: 1, 32, 96>}, {transform_indices = @transform_5, window_bounds = array<i64: 1, 1, 96>}, {transform_indices = @transform_6, window_bounds = array<i64: 1, 32, 32>}, {transform_indices = @transform_7, window_bounds = array<i64: 1, 1, 32>}, {transform_indices = @transform_8, window_bounds = array<i64: 1, 1, 32>}, {transform_indices = @transform_9, window_bounds = array<i64: 1, 1, 32>}, {transform_indices = @transform_10, window_bounds = array<i64: 1, 32, 32>}, {transform_indices = @transform_11, window_bounds = array<i64: 1, 1, 32>}, {transform_indices = @transform_12, window_bounds = array<i64: 1, 32, 32>}, {transform_indices = @transform_13, window_bounds = array<i64: 1, 1, 32>}, {pipeline_mode = #tpu.pipeline_mode<synchronous>, transform_indices = @transform_14, window_bounds = array<i64: 1, 32>}, {pipeline_mode = #tpu.pipeline_mode<synchronous>, transform_indices = @transform_15, window_bounds = array<i64: 1, 32>}, {transform_indices = @transform_16, window_bounds = array<i64: 2, 32>}]} {
    %c0_i32 = arith.constant 0 : i32
    %0 = arith.cmpi eq, %arg1, %c0_i32 : i32
    %1 = arith.extui %0 : i1 to i32
    %c0_i32_0 = arith.constant 0 : i32
    %2 = arith.cmpi ne, %1, %c0_i32_0 : i32
    scf.if %2 {
      %c0_73 = arith.constant 0 : index
      %c0_74 = arith.constant 0 : index
      %c0_75 = arith.constant 0 : index
      %195 = vector.load %arg2[%c0_73, %c0_74, %c0_75] : memref<2x8x32xf32, #tpu.memory_space<vmem>>, vector<2x8x32xf32>
      %c0_76 = arith.constant 0 : index
      %c0_77 = arith.constant 0 : index
      %c0_78 = arith.constant 0 : index
      %196 = vector.load %arg3[%c0_76, %c0_77, %c0_78] : memref<1x8x32xf32, #tpu.memory_space<vmem>>, vector<1x8x32xf32>
      %197 = vector.broadcast %196 : vector<1x8x32xf32> to vector<2x8x32xf32>
      %198 = arith.addf %195, %197 : vector<2x8x32xf32>
      %199 = vector.shape_cast %198 : vector<2x8x32xf32> to vector<16x32xf32>
      %c0_79 = arith.constant 0 : index
      %c0_80 = arith.constant 0 : index
      %200 = vector.load %arg19[%c0_79, %c0_80] : memref<16x32xf32, #tpu.memory_space<vmem>>, vector<16x32xf32>
      tpu.vector_store %arg19[%c0_79, %c0_80], %199 {strides = array<i32>} : memref<16x32xf32, #tpu.memory_space<vmem>>, vector<16x32xf32>,
    } else {
    }
    %c0 = arith.constant 0 : index
    %c0_1 = arith.constant 0 : index
    %3 = vector.load %arg19[%c0, %c0_1] : memref<16x32xf32, #tpu.memory_space<vmem>>, vector<16x32xf32>
    %c0_2 = arith.constant 0 : index
    %c0_3 = arith.constant 0 : index
    %c0_4 = arith.constant 0 : index
    %4 = vector.load %arg4[%c0_2, %c0_3, %c0_4] : memref<1x1x32xf32, #tpu.memory_space<vmem>>, vector<1x1x32xf32>
    %5 = vector.shape_cast %4 : vector<1x1x32xf32> to vector<1x32xf32>
    %c0_5 = arith.constant 0 : index
    %c0_6 = arith.constant 0 : index
    %c0_7 = arith.constant 0 : index
    %6 = vector.load %arg5[%c0_5, %c0_6, %c0_7] : memref<1x1x32xf32, #tpu.memory_space<vmem>>, vector<1x1x32xf32>
    %7 = vector.shape_cast %6 : vector<1x1x32xf32> to vector<1x32xf32>
    %cst = arith.constant dense<0.000000e+00> : vector<16xf32>
    %8 = vector.multi_reduction <add>, %3, %cst [1] : vector<16x32xf32> to vector<16xf32>
    %9 = vector.shape_cast %8 : vector<16xf32> to vector<16x1xf32>
    %cst_8 = arith.constant 3.200000e+01 : f32
    %10 = vector.broadcast %cst_8 : f32 to vector<16x1xf32>
    %11 = arith.divf %9, %10 : vector<16x1xf32>
    %12 = vector.broadcast %11 : vector<16x1xf32> to vector<16x32xf32>
    %13 = arith.subf %3, %12 : vector<16x32xf32>
    %14 = arith.mulf %13, %13 : vector<16x32xf32>
    %cst_9 = arith.constant dense<0.000000e+00> : vector<16xf32>
    %15 = vector.multi_reduction <add>, %14, %cst_9 [1] : vector<16x32xf32> to vector<16xf32>
    %16 = vector.shape_cast %15 : vector<16xf32> to vector<16x1xf32>
    %cst_10 = arith.constant 3.200000e+01 : f32
    %17 = vector.broadcast %cst_10 : f32 to vector<16x1xf32>
    %18 = arith.divf %16, %17 : vector<16x1xf32>
    %19 = vector.broadcast %11 : vector<16x1xf32> to vector<16x32xf32>
    %20 = arith.subf %3, %19 : vector<16x32xf32>
    %cst_11 = arith.constant 9.99999997E-7 : f32
    %21 = vector.broadcast %cst_11 : f32 to vector<16x1xf32>
    %22 = arith.addf %18, %21 : vector<16x1xf32>
    %23 = math.rsqrt %22 : vector<16x1xf32>
    %24 = vector.broadcast %23 : vector<16x1xf32> to vector<16x32xf32>
    %25 = arith.mulf %20, %24 : vector<16x32xf32>
    %26 = vector.broadcast %5 : vector<1x32xf32> to vector<16x32xf32>
    %27 = arith.mulf %25, %26 : vector<16x32xf32>
    %28 = vector.broadcast %7 : vector<1x32xf32> to vector<16x32xf32>
    %29 = arith.addf %27, %28 : vector<16x32xf32>
    %30 = arith.truncf %29 : vector<16x32xf32> to vector<16x32xbf16>
    %c0_12 = arith.constant 0 : index
    %c0_13 = arith.constant 0 : index
    %c0_14 = arith.constant 0 : index
    %31 = vector.load %arg6[%c0_12, %c0_13, %c0_14] : memref<1x32x96xbf16, #tpu.memory_space<vmem>>, vector<1x32x96xbf16>
    %32 = vector.shape_cast %31 : vector<1x32x96xbf16> to vector<32x96xbf16>
    %cst_15 = arith.constant dense<0.000000e+00> : vector<16x96xf32>
    %33 = tpu.matmul %30, %32, %cst_15 {dimension_numbers = #tpu.dot_dimension_numbers<[1], [0], [0], [1], [0, 0, 1, 1], [], []>} : vector<16x32xbf16>, vector<32x96xbf16>, vector<16x96xf32> -> vector<16x96xf32>
    %c0_16 = arith.constant 0 : index
    %c0_17 = arith.constant 0 : index
    %c0_18 = arith.constant 0 : index
    %34 = vector.load %arg7[%c0_16, %c0_17, %c0_18] : memref<1x1x96xf32, #tpu.memory_space<vmem>>, vector<1x1x96xf32>
    %35 = vector.shape_cast %34 : vector<1x1x96xf32> to vector<1x96xf32>
    %36 = vector.broadcast %35 : vector<1x96xf32> to vector<16x96xf32>
    %37 = arith.addf %33, %36 : vector<16x96xf32>
    %38 = vector.extract_strided_slice %37 {offsets = [0, 0], sizes = [16, 8], strides = [1, 1]} : vector<16x96xf32> to vector<16x8xf32>
    %39 = arith.truncf %38 : vector<16x8xf32> to vector<16x8xbf16>
    %40 = vector.shape_cast %39 : vector<16x8xbf16> to vector<2x8x8xbf16>
    %41 = vector.extract_strided_slice %37 {offsets = [0, 32], sizes = [16, 8], strides = [1, 1]} : vector<16x96xf32> to vector<16x8xf32>
    %42 = arith.truncf %41 : vector<16x8xf32> to vector<16x8xbf16>
    %43 = vector.shape_cast %42 : vector<16x8xbf16> to vector<2x8x8xbf16>
    %44 = vector.extract_strided_slice %37 {offsets = [0, 64], sizes = [16, 8], strides = [1, 1]} : vector<16x96xf32> to vector<16x8xf32>
    %45 = arith.truncf %44 : vector<16x8xf32> to vector<16x8xbf16>
    %46 = vector.shape_cast %45 : vector<16x8xbf16> to vector<2x8x8xbf16>
    "tpu.trace_start"() <{level = 10 : i32, message = "bne,bme->bnm"}> : () -> ()
    %cst_19 = arith.constant dense<0.000000e+00> : vector<2x8x8xf32>
    %47 = tpu.matmul %40, %43, %cst_19 {dimension_numbers = #tpu.dot_dimension_numbers<[2], [2], [1], [1], [0, 0, 0, 1, 1, 1], [0], [0]>} : vector<2x8x8xbf16>, vector<2x8x8xbf16>, vector<2x8x8xf32> -> vector<2x8x8xf32>
    "tpu.trace_stop"() : () -> ()
    %cst_20 = arith.constant dense<0xFF800000> : vector<2x8xf32>
    %48 = vector.multi_reduction <maximumf>, %47, %cst_20 [2] : vector<2x8x8xf32> to vector<2x8xf32>
    %49 = vector.shape_cast %48 : vector<2x8xf32> to vector<2x8x1xf32>
    %50 = vector.broadcast %49 : vector<2x8x1xf32> to vector<2x8x8xf32>
    %51 = arith.subf %47, %50 : vector<2x8x8xf32>
    %52 = math.exp %51 : vector<2x8x8xf32>
    %cst_21 = arith.constant dense<0.000000e+00> : vector<2x8xf32>
    %53 = vector.multi_reduction <add>, %52, %cst_21 [2] : vector<2x8x8xf32> to vector<2x8xf32>
    %54 = vector.shape_cast %53 : vector<2x8xf32> to vector<2x8x1xf32>
    %55 = tpu.reciprocal %54 {approx = true} : vector<2x8x1xf32> -> vector<2x8x1xf32>
    %56 = vector.broadcast %55 : vector<2x8x1xf32> to vector<2x8x8xf32>
    %57 = arith.mulf %52, %56 : vector<2x8x8xf32>
    %58 = arith.truncf %57 : vector<2x8x8xf32> to vector<2x8x8xbf16>
    "tpu.trace_start"() <{level = 10 : i32, message = "bnm,bme->bne"}> : () -> ()
    %cst_22 = arith.constant dense<0.000000e+00> : vector<2x8x8xf32>
    %59 = tpu.matmul %58, %46, %cst_22 {dimension_numbers = #tpu.dot_dimension_numbers<[2], [1], [1], [2], [0, 0, 0, 1, 1, 2], [0], [0]>} : vector<2x8x8xbf16>, vector<2x8x8xbf16>, vector<2x8x8xf32> -> vector<2x8x8xf32>
    "tpu.trace_stop"() : () -> ()
    %60 = vector.shape_cast %59 : vector<2x8x8xf32> to vector<16x8xf32>
    %61 = vector.extract_strided_slice %37 {offsets = [0, 8], sizes = [16, 8], strides = [1, 1]} : vector<16x96xf32> to vector<16x8xf32>
    %62 = arith.truncf %61 : vector<16x8xf32> to vector<16x8xbf16>
    %63 = vector.shape_cast %62 : vector<16x8xbf16> to vector<2x8x8xbf16>
    %64 = vector.extract_strided_slice %37 {offsets = [0, 40], sizes = [16, 8], strides = [1, 1]} : vector<16x96xf32> to vector<16x8xf32>
    %65 = arith.truncf %64 : vector<16x8xf32> to vector<16x8xbf16>
    %66 = vector.shape_cast %65 : vector<16x8xbf16> to vector<2x8x8xbf16>
    %67 = vector.extract_strided_slice %37 {offsets = [0, 72], sizes = [16, 8], strides = [1, 1]} : vector<16x96xf32> to vector<16x8xf32>
    %68 = arith.truncf %67 : vector<16x8xf32> to vector<16x8xbf16>
    %69 = vector.shape_cast %68 : vector<16x8xbf16> to vector<2x8x8xbf16>
    "tpu.trace_start"() <{level = 10 : i32, message = "bne,bme->bnm"}> : () -> ()
    %cst_23 = arith.constant dense<0.000000e+00> : vector<2x8x8xf32>
    %70 = tpu.matmul %63, %66, %cst_23 {dimension_numbers = #tpu.dot_dimension_numbers<[2], [2], [1], [1], [0, 0, 0, 1, 1, 1], [0], [0]>} : vector<2x8x8xbf16>, vector<2x8x8xbf16>, vector<2x8x8xf32> -> vector<2x8x8xf32>
    "tpu.trace_stop"() : () -> ()
    %cst_24 = arith.constant dense<0xFF800000> : vector<2x8xf32>
    %71 = vector.multi_reduction <maximumf>, %70, %cst_24 [2] : vector<2x8x8xf32> to vector<2x8xf32>
    %72 = vector.shape_cast %71 : vector<2x8xf32> to vector<2x8x1xf32>
    %73 = vector.broadcast %72 : vector<2x8x1xf32> to vector<2x8x8xf32>
    %74 = arith.subf %70, %73 : vector<2x8x8xf32>
    %75 = math.exp %74 : vector<2x8x8xf32>
    %cst_25 = arith.constant dense<0.000000e+00> : vector<2x8xf32>
    %76 = vector.multi_reduction <add>, %75, %cst_25 [2] : vector<2x8x8xf32> to vector<2x8xf32>
    %77 = vector.shape_cast %76 : vector<2x8xf32> to vector<2x8x1xf32>
    %78 = tpu.reciprocal %77 {approx = true} : vector<2x8x1xf32> -> vector<2x8x1xf32>
    %79 = vector.broadcast %78 : vector<2x8x1xf32> to vector<2x8x8xf32>
    %80 = arith.mulf %75, %79 : vector<2x8x8xf32>
    %81 = arith.truncf %80 : vector<2x8x8xf32> to vector<2x8x8xbf16>
    "tpu.trace_start"() <{level = 10 : i32, message = "bnm,bme->bne"}> : () -> ()
    %cst_26 = arith.constant dense<0.000000e+00> : vector<2x8x8xf32>
    %82 = tpu.matmul %81, %69, %cst_26 {dimension_numbers = #tpu.dot_dimension_numbers<[2], [1], [1], [2], [0, 0, 0, 1, 1, 2], [0], [0]>} : vector<2x8x8xbf16>, vector<2x8x8xbf16>, vector<2x8x8xf32> -> vector<2x8x8xf32>
    "tpu.trace_stop"() : () -> ()
    %83 = vector.shape_cast %82 : vector<2x8x8xf32> to vector<16x8xf32>
    %84 = vector.extract_strided_slice %37 {offsets = [0, 16], sizes = [16, 8], strides = [1, 1]} : vector<16x96xf32> to vector<16x8xf32>
    %85 = arith.truncf %84 : vector<16x8xf32> to vector<16x8xbf16>
    %86 = vector.shape_cast %85 : vector<16x8xbf16> to vector<2x8x8xbf16>
    %87 = vector.extract_strided_slice %37 {offsets = [0, 48], sizes = [16, 8], strides = [1, 1]} : vector<16x96xf32> to vector<16x8xf32>
    %88 = arith.truncf %87 : vector<16x8xf32> to vector<16x8xbf16>
    %89 = vector.shape_cast %88 : vector<16x8xbf16> to vector<2x8x8xbf16>
    %90 = vector.extract_strided_slice %37 {offsets = [0, 80], sizes = [16, 8], strides = [1, 1]} : vector<16x96xf32> to vector<16x8xf32>
    %91 = arith.truncf %90 : vector<16x8xf32> to vector<16x8xbf16>
    %92 = vector.shape_cast %91 : vector<16x8xbf16> to vector<2x8x8xbf16>
    "tpu.trace_start"() <{level = 10 : i32, message = "bne,bme->bnm"}> : () -> ()
    %cst_27 = arith.constant dense<0.000000e+00> : vector<2x8x8xf32>
    %93 = tpu.matmul %86, %89, %cst_27 {dimension_numbers = #tpu.dot_dimension_numbers<[2], [2], [1], [1], [0, 0, 0, 1, 1, 1], [0], [0]>} : vector<2x8x8xbf16>, vector<2x8x8xbf16>, vector<2x8x8xf32> -> vector<2x8x8xf32>
    "tpu.trace_stop"() : () -> ()
    %cst_28 = arith.constant dense<0xFF800000> : vector<2x8xf32>
    %94 = vector.multi_reduction <maximumf>, %93, %cst_28 [2] : vector<2x8x8xf32> to vector<2x8xf32>
    %95 = vector.shape_cast %94 : vector<2x8xf32> to vector<2x8x1xf32>
    %96 = vector.broadcast %95 : vector<2x8x1xf32> to vector<2x8x8xf32>
    %97 = arith.subf %93, %96 : vector<2x8x8xf32>
    %98 = math.exp %97 : vector<2x8x8xf32>
    %cst_29 = arith.constant dense<0.000000e+00> : vector<2x8xf32>
    %99 = vector.multi_reduction <add>, %98, %cst_29 [2] : vector<2x8x8xf32> to vector<2x8xf32>
    %100 = vector.shape_cast %99 : vector<2x8xf32> to vector<2x8x1xf32>
    %101 = tpu.reciprocal %100 {approx = true} : vector<2x8x1xf32> -> vector<2x8x1xf32>
    %102 = vector.broadcast %101 : vector<2x8x1xf32> to vector<2x8x8xf32>
    %103 = arith.mulf %98, %102 : vector<2x8x8xf32>
    %104 = arith.truncf %103 : vector<2x8x8xf32> to vector<2x8x8xbf16>
    "tpu.trace_start"() <{level = 10 : i32, message = "bnm,bme->bne"}> : () -> ()
    %cst_30 = arith.constant dense<0.000000e+00> : vector<2x8x8xf32>
    %105 = tpu.matmul %104, %92, %cst_30 {dimension_numbers = #tpu.dot_dimension_numbers<[2], [1], [1], [2], [0, 0, 0, 1, 1, 2], [0], [0]>} : vector<2x8x8xbf16>, vector<2x8x8xbf16>, vector<2x8x8xf32> -> vector<2x8x8xf32>
    "tpu.trace_stop"() : () -> ()
    %106 = vector.shape_cast %105 : vector<2x8x8xf32> to vector<16x8xf32>
    %107 = vector.extract_strided_slice %37 {offsets = [0, 24], sizes = [16, 8], strides = [1, 1]} : vector<16x96xf32> to vector<16x8xf32>
    %108 = arith.truncf %107 : vector<16x8xf32> to vector<16x8xbf16>
    %109 = vector.shape_cast %108 : vector<16x8xbf16> to vector<2x8x8xbf16>
    %110 = vector.extract_strided_slice %37 {offsets = [0, 56], sizes = [16, 8], strides = [1, 1]} : vector<16x96xf32> to vector<16x8xf32>
    %111 = arith.truncf %110 : vector<16x8xf32> to vector<16x8xbf16>
    %112 = vector.shape_cast %111 : vector<16x8xbf16> to vector<2x8x8xbf16>
    %113 = vector.extract_strided_slice %37 {offsets = [0, 88], sizes = [16, 8], strides = [1, 1]} : vector<16x96xf32> to vector<16x8xf32>
    %114 = arith.truncf %113 : vector<16x8xf32> to vector<16x8xbf16>
    %115 = vector.shape_cast %114 : vector<16x8xbf16> to vector<2x8x8xbf16>
    "tpu.trace_start"() <{level = 10 : i32, message = "bne,bme->bnm"}> : () -> ()
    %cst_31 = arith.constant dense<0.000000e+00> : vector<2x8x8xf32>
    %116 = tpu.matmul %109, %112, %cst_31 {dimension_numbers = #tpu.dot_dimension_numbers<[2], [2], [1], [1], [0, 0, 0, 1, 1, 1], [0], [0]>} : vector<2x8x8xbf16>, vector<2x8x8xbf16>, vector<2x8x8xf32> -> vector<2x8x8xf32>
    "tpu.trace_stop"() : () -> ()
    %cst_32 = arith.constant dense<0xFF800000> : vector<2x8xf32>
    %117 = vector.multi_reduction <maximumf>, %116, %cst_32 [2] : vector<2x8x8xf32> to vector<2x8xf32>
    %118 = vector.shape_cast %117 : vector<2x8xf32> to vector<2x8x1xf32>
    %119 = vector.broadcast %118 : vector<2x8x1xf32> to vector<2x8x8xf32>
    %120 = arith.subf %116, %119 : vector<2x8x8xf32>
    %121 = math.exp %120 : vector<2x8x8xf32>
    %cst_33 = arith.constant dense<0.000000e+00> : vector<2x8xf32>
    %122 = vector.multi_reduction <add>, %121, %cst_33 [2] : vector<2x8x8xf32> to vector<2x8xf32>
    %123 = vector.shape_cast %122 : vector<2x8xf32> to vector<2x8x1xf32>
    %124 = tpu.reciprocal %123 {approx = true} : vector<2x8x1xf32> -> vector<2x8x1xf32>
    %125 = vector.broadcast %124 : vector<2x8x1xf32> to vector<2x8x8xf32>
    %126 = arith.mulf %121, %125 : vector<2x8x8xf32>
    %127 = arith.truncf %126 : vector<2x8x8xf32> to vector<2x8x8xbf16>
    "tpu.trace_start"() <{level = 10 : i32, message = "bnm,bme->bne"}> : () -> ()
    %cst_34 = arith.constant dense<0.000000e+00> : vector<2x8x8xf32>
    %128 = tpu.matmul %127, %115, %cst_34 {dimension_numbers = #tpu.dot_dimension_numbers<[2], [1], [1], [2], [0, 0, 0, 1, 1, 2], [0], [0]>} : vector<2x8x8xbf16>, vector<2x8x8xbf16>, vector<2x8x8xf32> -> vector<2x8x8xf32>
    "tpu.trace_stop"() : () -> ()
    %129 = vector.shape_cast %128 : vector<2x8x8xf32> to vector<16x8xf32>
    %130 = tpu.concatenate %60, %83, %106, %129 in 1 : vector<16x8xf32>, vector<16x8xf32>, vector<16x8xf32>, vector<16x8xf32> -> vector<16x32xf32>
    %131 = arith.truncf %130 : vector<16x32xf32> to vector<16x32xbf16>
    %c0_35 = arith.constant 0 : index
    %c0_36 = arith.constant 0 : index
    %c0_37 = arith.constant 0 : index
    %132 = vector.load %arg8[%c0_35, %c0_36, %c0_37] : memref<1x32x32xbf16, #tpu.memory_space<vmem>>, vector<1x32x32xbf16>
    %133 = vector.shape_cast %132 : vector<1x32x32xbf16> to vector<32x32xbf16>
    %cst_38 = arith.constant dense<0.000000e+00> : vector<16x32xf32>
    %134 = tpu.matmul %131, %133, %cst_38 {dimension_numbers = #tpu.dot_dimension_numbers<[1], [0], [0], [1], [0, 0, 1, 1], [], []>} : vector<16x32xbf16>, vector<32x32xbf16>, vector<16x32xf32> -> vector<16x32xf32>
    %c0_39 = arith.constant 0 : index
    %c0_40 = arith.constant 0 : index
    %c0_41 = arith.constant 0 : index
    %135 = vector.load %arg9[%c0_39, %c0_40, %c0_41] : memref<1x1x32xf32, #tpu.memory_space<vmem>>, vector<1x1x32xf32>
    %136 = vector.shape_cast %135 : vector<1x1x32xf32> to vector<1x32xf32>
    %137 = vector.broadcast %136 : vector<1x32xf32> to vector<16x32xf32>
    %138 = arith.addf %134, %137 : vector<16x32xf32>
    %139 = arith.addf %3, %138 : vector<16x32xf32>
    %c0_42 = arith.constant 0 : index
    %c0_43 = arith.constant 0 : index
    %c0_44 = arith.constant 0 : index
    %140 = vector.load %arg10[%c0_42, %c0_43, %c0_44] : memref<1x1x32xf32, #tpu.memory_space<vmem>>, vector<1x1x32xf32>
    %141 = vector.shape_cast %140 : vector<1x1x32xf32> to vector<1x32xf32>
    %c0_45 = arith.constant 0 : index
    %c0_46 = arith.constant 0 : index
    %c0_47 = arith.constant 0 : index
    %142 = vector.load %arg11[%c0_45, %c0_46, %c0_47] : memref<1x1x32xf32, #tpu.memory_space<vmem>>, vector<1x1x32xf32>
    %143 = vector.shape_cast %142 : vector<1x1x32xf32> to vector<1x32xf32>
    %cst_48 = arith.constant dense<0.000000e+00> : vector<16xf32>
    %144 = vector.multi_reduction <add>, %139, %cst_48 [1] : vector<16x32xf32> to vector<16xf32>
    %145 = vector.shape_cast %144 : vector<16xf32> to vector<16x1xf32>
    %cst_49 = arith.constant 3.200000e+01 : f32
    %146 = vector.broadcast %cst_49 : f32 to vector<16x1xf32>
    %147 = arith.divf %145, %146 : vector<16x1xf32>
    %148 = vector.broadcast %147 : vector<16x1xf32> to vector<16x32xf32>
    %149 = arith.subf %139, %148 : vector<16x32xf32>
    %150 = arith.mulf %149, %149 : vector<16x32xf32>
    %cst_50 = arith.constant dense<0.000000e+00> : vector<16xf32>
    %151 = vector.multi_reduction <add>, %150, %cst_50 [1] : vector<16x32xf32> to vector<16xf32>
    %152 = vector.shape_cast %151 : vector<16xf32> to vector<16x1xf32>
    %cst_51 = arith.constant 3.200000e+01 : f32
    %153 = vector.broadcast %cst_51 : f32 to vector<16x1xf32>
    %154 = arith.divf %152, %153 : vector<16x1xf32>
    %155 = vector.broadcast %147 : vector<16x1xf32> to vector<16x32xf32>
    %156 = arith.subf %139, %155 : vector<16x32xf32>
    %cst_52 = arith.constant 9.99999997E-7 : f32
    %157 = vector.broadcast %cst_52 : f32 to vector<16x1xf32>
    %158 = arith.addf %154, %157 : vector<16x1xf32>
    %159 = math.rsqrt %158 : vector<16x1xf32>
    %160 = vector.broadcast %159 : vector<16x1xf32> to vector<16x32xf32>
    %161 = arith.mulf %156, %160 : vector<16x32xf32>
    %162 = vector.broadcast %141 : vector<1x32xf32> to vector<16x32xf32>
    %163 = arith.mulf %161, %162 : vector<16x32xf32>
    %164 = vector.broadcast %143 : vector<1x32xf32> to vector<16x32xf32>
    %165 = arith.addf %163, %164 : vector<16x32xf32>
    %166 = arith.truncf %165 : vector<16x32xf32> to vector<16x32xbf16>
    %c0_53 = arith.constant 0 : index
    %c0_54 = arith.constant 0 : index
    %c0_55 = arith.constant 0 : index
    %167 = vector.load %arg12[%c0_53, %c0_54, %c0_55] : memref<1x32x32xbf16, #tpu.memory_space<vmem>>, vector<1x32x32xbf16>
    %168 = vector.shape_cast %167 : vector<1x32x32xbf16> to vector<32x32xbf16>
    %cst_56 = arith.constant dense<0.000000e+00> : vector<16x32xf32>
    %169 = tpu.matmul %166, %168, %cst_56 {dimension_numbers = #tpu.dot_dimension_numbers<[1], [0], [0], [1], [0, 0, 1, 1], [], []>} : vector<16x32xbf16>, vector<32x32xbf16>, vector<16x32xf32> -> vector<16x32xf32>
    %c0_57 = arith.constant 0 : index
    %c0_58 = arith.constant 0 : index
    %c0_59 = arith.constant 0 : index
    %170 = vector.load %arg13[%c0_57, %c0_58, %c0_59] : memref<1x1x32xf32, #tpu.memory_space<vmem>>, vector<1x1x32xf32>
    %171 = vector.shape_cast %170 : vector<1x1x32xf32> to vector<1x32xf32>
    %172 = vector.broadcast %171 : vector<1x32xf32> to vector<16x32xf32>
    %173 = arith.addf %169, %172 : vector<16x32xf32>
    %cst_60 = arith.constant 5.000000e-01 : f32
    %174 = vector.broadcast %cst_60 : f32 to vector<16x32xf32>
    %175 = arith.mulf %174, %173 : vector<16x32xf32>
    %cst_61 = arith.constant 0.707106769 : f32
    %176 = vector.broadcast %cst_61 : f32 to vector<16x32xf32>
    %177 = arith.mulf %173, %176 : vector<16x32xf32>
    %178 = math.erf %177 : vector<16x32xf32>
    %cst_62 = arith.constant 1.000000e+00 : f32
    %179 = vector.broadcast %cst_62 : f32 to vector<16x32xf32>
    %180 = arith.addf %179, %178 : vector<16x32xf32>
    %181 = arith.mulf %175, %180 : vector<16x32xf32>
    %182 = arith.truncf %181 : vector<16x32xf32> to vector<16x32xbf16>
    %c0_63 = arith.constant 0 : index
    %c0_64 = arith.constant 0 : index
    %c0_65 = arith.constant 0 : index
    %183 = vector.load %arg14[%c0_63, %c0_64, %c0_65] : memref<1x32x32xbf16, #tpu.memory_space<vmem>>, vector<1x32x32xbf16>
    %184 = vector.shape_cast %183 : vector<1x32x32xbf16> to vector<32x32xbf16>
    %cst_66 = arith.constant dense<0.000000e+00> : vector<16x32xf32>
    %185 = tpu.matmul %182, %184, %cst_66 {dimension_numbers = #tpu.dot_dimension_numbers<[1], [0], [0], [1], [0, 0, 1, 1], [], []>} : vector<16x32xbf16>, vector<32x32xbf16>, vector<16x32xf32> -> vector<16x32xf32>
    %c0_67 = arith.constant 0 : index
    %c0_68 = arith.constant 0 : index
    %c0_69 = arith.constant 0 : index
    %186 = vector.load %arg15[%c0_67, %c0_68, %c0_69] : memref<1x1x32xf32, #tpu.memory_space<vmem>>, vector<1x1x32xf32>
    %187 = vector.shape_cast %186 : vector<1x1x32xf32> to vector<1x32xf32>
    %188 = vector.broadcast %187 : vector<1x32xf32> to vector<16x32xf32>
    %189 = arith.addf %185, %188 : vector<16x32xf32>
    %190 = arith.addf %139, %189 : vector<16x32xf32>
    %c0_70 = arith.constant 0 : index
    %c0_71 = arith.constant 0 : index
    %191 = vector.load %arg19[%c0_70, %c0_71] : memref<16x32xf32, #tpu.memory_space<vmem>>, vector<16x32xf32>
    tpu.vector_store %arg19[%c0_70, %c0_71], %190 {strides = array<i32>} : memref<16x32xf32, #tpu.memory_space<vmem>>, vector<16x32xf32>,
    %c1_i32 = arith.constant 1 : i32
    %192 = arith.cmpi eq, %arg1, %c1_i32 : i32
    %193 = arith.extui %192 : i1 to i32
    %c0_i32_72 = arith.constant 0 : i32
    %194 = arith.cmpi ne, %193, %c0_i32_72 : i32
    scf.if %194 {
      %c0_73 = arith.constant 0 : index
      %c0_74 = arith.constant 0 : index
      %195 = vector.load %arg16[%c0_73, %c0_74] : memref<1x32xf32, #tpu.memory_space<vmem>>, vector<1x32xf32>
      %c0_75 = arith.constant 0 : index
      %c0_76 = arith.constant 0 : index
      %196 = vector.load %arg17[%c0_75, %c0_76] : memref<1x32xf32, #tpu.memory_space<vmem>>, vector<1x32xf32>
      %cst_77 = arith.constant dense<0.000000e+00> : vector<16xf32>
      %197 = vector.multi_reduction <add>, %190, %cst_77 [1] : vector<16x32xf32> to vector<16xf32>
      %198 = vector.shape_cast %197 : vector<16xf32> to vector<16x1xf32>
      %cst_78 = arith.constant 3.200000e+01 : f32
      %199 = vector.broadcast %cst_78 : f32 to vector<16x1xf32>
      %200 = arith.divf %198, %199 : vector<16x1xf32>
      %201 = vector.broadcast %200 : vector<16x1xf32> to vector<16x32xf32>
      %202 = arith.subf %190, %201 : vector<16x32xf32>
      %203 = arith.mulf %202, %202 : vector<16x32xf32>
      %cst_79 = arith.constant dense<0.000000e+00> : vector<16xf32>
      %204 = vector.multi_reduction <add>, %203, %cst_79 [1] : vector<16x32xf32> to vector<16xf32>
      %205 = vector.shape_cast %204 : vector<16xf32> to vector<16x1xf32>
      %cst_80 = arith.constant 3.200000e+01 : f32
      %206 = vector.broadcast %cst_80 : f32 to vector<16x1xf32>
      %207 = arith.divf %205, %206 : vector<16x1xf32>
      %208 = vector.broadcast %200 : vector<16x1xf32> to vector<16x32xf32>
      %209 = arith.subf %190, %208 : vector<16x32xf32>
      %cst_81 = arith.constant 9.99999997E-7 : f32
      %210 = vector.broadcast %cst_81 : f32 to vector<16x1xf32>
      %211 = arith.addf %207, %210 : vector<16x1xf32>
      %212 = math.rsqrt %211 : vector<16x1xf32>
      %213 = vector.broadcast %212 : vector<16x1xf32> to vector<16x32xf32>
      %214 = arith.mulf %209, %213 : vector<16x32xf32>
      %215 = vector.broadcast %195 : vector<1x32xf32> to vector<16x32xf32>
      %216 = arith.mulf %214, %215 : vector<16x32xf32>
      %217 = vector.broadcast %196 : vector<1x32xf32> to vector<16x32xf32>
      %218 = arith.addf %216, %217 : vector<16x32xf32>
      %219 = vector.shape_cast %218 : vector<16x32xf32> to vector<2x8x32xf32>
      %cst_82 = arith.constant dense<0.000000e+00> : vector<2x32xf32>
      %220 = vector.multi_reduction <add>, %219, %cst_82 [1] : vector<2x8x32xf32> to vector<2x32xf32>
      %cst_83 = arith.constant 8.000000e+00 : f32
      %221 = vector.broadcast %cst_83 : f32 to vector<2x32xf32>
      %222 = arith.divf %220, %221 : vector<2x32xf32>
      %c0_84 = arith.constant 0 : index
      %c0_85 = arith.constant 0 : index
      %223 = vector.load %arg18[%c0_84, %c0_85] : memref<2x32xf32, #tpu.memory_space<vmem>>, vector<2x32xf32>
      tpu.vector_store %arg18[%c0_84, %c0_85], %222 {strides = array<i32>} : memref<2x32xf32, #tpu.memory_space<vmem>>, vector<2x32xf32>,
    } else {
    }
    return
  }
  func.func @transform_0(%arg0: i32, %arg1: i32) -> (i32, i32, i32) {
    %c0_i32 = arith.constant 0 : i32
    %c0_i32_0 = arith.constant 0 : i32
    %c0_i32_1 = arith.constant 0 : i32
    return %arg0, %c0_i32, %c0_i32_0 : i32, i32, i32
  }
  func.func @transform_1(%arg0: i32, %arg1: i32) -> (i32, i32, i32) {
    %c0_i32 = arith.constant 0 : i32
    %c0_i32_0 = arith.constant 0 : i32
    %c0_i32_1 = arith.constant 0 : i32
    %c0_i32_2 = arith.constant 0 : i32
    return %c0_i32, %c0_i32_0, %c0_i32_1 : i32, i32, i32
  }
  func.func @transform_2(%arg0: i32, %arg1: i32) -> (i32, i32, i32) {
    %c0_i32 = arith.constant 0 : i32
    %c0_i32_0 = arith.constant 0 : i32
    %c0_i32_1 = arith.constant 0 : i32
    return %arg1, %c0_i32, %c0_i32_0 : i32, i32, i32
  }
  func.func @transform_3(%arg0: i32, %arg1: i32) -> (i32, i32, i32) {
    %c0_i32 = arith.constant 0 : i32
    %c0_i32_0 = arith.constant 0 : i32
    %c0_i32_1 = arith.constant 0 : i32
    return %arg1, %c0_i32, %c0_i32_0 : i32, i32, i32
  }
  func.func @transform_4(%arg0: i32, %arg1: i32) -> (i32, i32, i32) {
    %c0_i32 = arith.constant 0 : i32
    %c0_i32_0 = arith.constant 0 : i32
    %c0_i32_1 = arith.constant 0 : i32
    return %arg1, %c0_i32, %c0_i32_0 : i32, i32, i32
  }
  func.func @transform_5(%arg0: i32, %arg1: i32) -> (i32, i32, i32) {
    %c0_i32 = arith.constant 0 : i32
    %c0_i32_0 = arith.constant 0 : i32
    %c0_i32_1 = arith.constant 0 : i32
    return %arg1, %c0_i32, %c0_i32_0 : i32, i32, i32
  }
  func.func @transform_6(%arg0: i32, %arg1: i32) -> (i32, i32, i32) {
    %c0_i32 = arith.constant 0 : i32
    %c0_i32_0 = arith.constant 0 : i32
    %c0_i32_1 = arith.constant 0 : i32
    return %arg1, %c0_i32, %c0_i32_0 : i32, i32, i32
  }
  func.func @transform_7(%arg0: i32, %arg1: i32) -> (i32, i32, i32) {
    %c0_i32 = arith.constant 0 : i32
    %c0_i32_0 = arith.constant 0 : i32
    %c0_i32_1 = arith.constant 0 : i32
    return %arg1, %c0_i32, %c0_i32_0 : i32, i32, i32
  }
  func.func @transform_8(%arg0: i32, %arg1: i32) -> (i32, i32, i32) {
    %c0_i32 = arith.constant 0 : i32
    %c0_i32_0 = arith.constant 0 : i32
    %c0_i32_1 = arith.constant 0 : i32
    return %arg1, %c0_i32, %c0_i32_0 : i32, i32, i32
  }
  func.func @transform_9(%arg0: i32, %arg1: i32) -> (i32, i32, i32) {
    %c0_i32 = arith.constant 0 : i32
    %c0_i32_0 = arith.constant 0 : i32
    %c0_i32_1 = arith.constant 0 : i32
    return %arg1, %c0_i32, %c0_i32_0 : i32, i32, i32
  }
  func.func @transform_10(%arg0: i32, %arg1: i32) -> (i32, i32, i32) {
    %c0_i32 = arith.constant 0 : i32
    %c0_i32_0 = arith.constant 0 : i32
    %c0_i32_1 = arith.constant 0 : i32
    return %arg1, %c0_i32, %c0_i32_0 : i32, i32, i32
  }
  func.func @transform_11(%arg0: i32, %arg1: i32) -> (i32, i32, i32) {
    %c0_i32 = arith.constant 0 : i32
    %c0_i32_0 = arith.constant 0 : i32
    %c0_i32_1 = arith.constant 0 : i32
    return %arg1, %c0_i32, %c0_i32_0 : i32, i32, i32
  }
  func.func @transform_12(%arg0: i32, %arg1: i32) -> (i32, i32, i32) {
    %c0_i32 = arith.constant 0 : i32
    %c0_i32_0 = arith.constant 0 : i32
    %c0_i32_1 = arith.constant 0 : i32
    return %arg1, %c0_i32, %c0_i32_0 : i32, i32, i32
  }
  func.func @transform_13(%arg0: i32, %arg1: i32) -> (i32, i32, i32) {
    %c0_i32 = arith.constant 0 : i32
    %c0_i32_0 = arith.constant 0 : i32
    %c0_i32_1 = arith.constant 0 : i32
    return %arg1, %c0_i32, %c0_i32_0 : i32, i32, i32
  }
  func.func @transform_14(%arg0: i32, %arg1: i32) -> (i32, i32) {
    %c0_i32 = arith.constant 0 : i32
    %c0_i32_0 = arith.constant 0 : i32
    %c0_i32_1 = arith.constant 0 : i32
    return %c0_i32, %c0_i32_0 : i32, i32
  }
  func.func @transform_15(%arg0: i32, %arg1: i32) -> (i32, i32) {
    %c0_i32 = arith.constant 0 : i32
    %c0_i32_0 = arith.constant 0 : i32
    %c0_i32_1 = arith.constant 0 : i32
    return %c0_i32, %c0_i32_0 : i32, i32
  }
  func.func @transform_16(%arg0: i32, %arg1: i32) -> (i32, i32) {
    %c0_i32 = arith.constant 0 : i32
    %c0_i32_0 = arith.constant 0 : i32
    return %arg0, %c0_i32 : i32, i32
  }
}

</mosaic_0001>

<llo_original>
// kernel: tpu_custom_call.1
$region0: #{tpu_custom_call.1}
  #allocation0 [shape = 'u32[]', space=smem, size = 0x4, offset = 0x4, fixed_abs, tag = 'smem constant byte address 0x4 - core index']
  #allocation1 [shape = 'u32[144,128]{1,0:T(1,128)}', space=vmem, size = 0x12000, scoped, tag = 'internal scratch']
  #allocation2 [shape = 'f32[16,32]{1,0:T(8,128)}', space=vmem, size = 0x2000, scoped, tag = 'scratch operand']
  %s0 = inlined_call_operand.hbm [shape: f32[2,8,32], index: 0, kind: input, shape index: {}]
  %s1 = inlined_call_operand.hbm [shape: f32[1,8,32], index: 1, kind: input, shape index: {}]
  %s2 = inlined_call_operand.hbm [shape: f32[2,1,32], index: 2, kind: input, shape index: {}]
  %s3 = inlined_call_operand.hbm [shape: f32[2,1,32], index: 3, kind: input, shape index: {}]
  %s4 = inlined_call_operand.hbm [shape: bf16[2,32,96], index: 4, kind: input, shape index: {}]
  %s5 = inlined_call_operand.hbm [shape: f32[2,1,96], index: 5, kind: input, shape index: {}]
  %s6 = inlined_call_operand.hbm [shape: bf16[2,32,32], index: 6, kind: input, shape index: {}]
  %s7 = inlined_call_operand.hbm [shape: f32[2,1,32], index: 7, kind: input, shape index: {}]
  %s8 = inlined_call_operand.hbm [shape: f32[2,1,32], index: 8, kind: input, shape index: {}]
  %s9 = inlined_call_operand.hbm [shape: f32[2,1,32], index: 9, kind: input, shape index: {}]
  %s10 = inlined_call_operand.hbm [shape: bf16[2,32,32], index: 10, kind: input, shape index: {}]
  %s11 = inlined_call_operand.hbm [shape: f32[2,1,32], index: 11, kind: input, shape index: {}]
  %s12 = inlined_call_operand.hbm [shape: bf16[2,32,32], index: 12, kind: input, shape index: {}]
  %s13 = inlined_call_operand.hbm [shape: f32[2,1,32], index: 13, kind: input, shape index: {}]
  %s14 = inlined_call_operand.hbm [shape: f32[1,32], index: 14, kind: input, shape index: {}]
  %s15 = inlined_call_operand.hbm [shape: f32[1,32], index: 15, kind: input, shape index: {}]
  %s16 = inlined_call_operand.hbm [shape: f32[2,32], index: 16, kind: output, shape index: {}]
  %s17 = sld [smem:[#allocation0]]
  $region169: #{tpu_custom_call.1} parent=0
    _
  %s19 = ssub.s32 1, %s17
  %s20 = scalar_select 0, %s19, %s17
  $region1: #{tpu_custom_call.1} parent=0
    #allocation3 [shape = 'u8[8192]{0}', space=vmem, size = 0x2000, scoped, tag = 'input window, operand 0, single buffered']
    #allocation4 [shape = 's32[2]{0}', space=sflag, size = 0x8, scoped, tag = 'scoped memory for tpu_custom_call.1']
    #allocation5 [shape = 's32[2]{0}', space=sflag, size = 0x8, scoped, tag = 'scoped memory for tpu_custom_call.1']
    #allocation6 [shape = 'u8[4096]{0}', space=vmem, size = 0x1000, scoped, tag = 'input window, operand 1, single buffered']
    #allocation7 [shape = 's32[1]{0}', space=sflag, size = 0x4, scoped, tag = 'scoped memory for tpu_custom_call.1']
    #allocation8 [shape = 'u8[1024]{0}', space=vmem, size = 0x400, scoped, tag = 'input window, operand 2']
    #allocation9 [shape = 'u8[1024]{0}', space=vmem, size = 0x400, scoped, tag = 'input window, operand 3']
    #allocation10 [shape = 'u8[16384]{0}', space=vmem, size = 0x4000, scoped, tag = 'input window, operand 4']
    #allocation11 [shape = 'u8[1024]{0}', space=vmem, size = 0x400, scoped, tag = 'input window, operand 5']
    #allocation12 [shape = 'u8[16384]{0}', space=vmem, size = 0x4000, scoped, tag = 'input window, operand 6']
    #allocation13 [shape = 'u8[1024]{0}', space=vmem, size = 0x400, scoped, tag = 'input window, operand 7']
    #allocation14 [shape = 'u8[1024]{0}', space=vmem, size = 0x400, scoped, tag = 'input window, operand 8']
    #allocation15 [shape = 'u8[1024]{0}', space=vmem, size = 0x400, scoped, tag = 'input window, operand 9']
    #allocation16 [shape = 'u8[16384]{0}', space=vmem, size = 0x4000, scoped, tag = 'input window, operand 10']
    #allocation17 [shape = 'u8[1024]{0}', space=vmem, size = 0x400, scoped, tag = 'input window, operand 11']
    #allocation18 [shape = 'u8[16384]{0}', space=vmem, size = 0x4000, scoped, tag = 'input window, operand 12']
    #allocation19 [shape = 'u8[1024]{0}', space=vmem, size = 0x400, scoped, tag = 'input window, operand 13']
    #allocation20 [shape = 'u8[512]{0}', space=vmem, size = 0x400, scoped, tag = 'input window, operand 14, single buffered']
    #allocation21 [shape = 'u8[512]{0}', space=vmem, size = 0x400, scoped, tag = 'input window, operand 15, single buffered']
    #allocation22 [shape = 's32[1]{0}', space=sflag, size = 0x4, scoped, tag = 'scoped memory for tpu_custom_call.1']
    #allocation23 [shape = 'u8[1024]{0}', space=vmem, size = 0x400, scoped, tag = 'output window, operand 0, single buffered']
    %21 = vsyncpa [#allocation4], 0
    %22 = vsyncpa [#allocation7], 0
    %23 = vsyncpa [#allocation22], 0
    %24 = vsyncpa [#allocation5], 0
    loop: start=0, step=1, limit=4
    $region2: #{tpu_custom_call.1} parent=1 // loop_pre_header
      _
    $region3: #{tpu_custom_call.1} parent=1 // loop_header
      %s26 = sphi 0, %s30
      %p27 = scmp.ge.s32.totalorder %s26, 4
      %s33 = sphi 0, %s45
      %s34 = sphi 0, %s41
      %s35 = sphi 0, %s33
      %s36 = sphi 0, %s34
      %s37 = sphi 0, %s35
      %s38 = sphi 0, %s36
      %s48 = sphi 0, %s50
      %s51 = sphi 0, %s48
      %s52 = sphi 0, %s51
      %s68 = sphi 0, %s52
      %s72 = sphi 0, %s72
      %s74 = sphi 0, %s72
      %s75 = sphi 0, %s74
      %s89 = sphi 0, %s75
      %s95 = sphi 0, %s97
      %s98 = sphi 0, %s95
      %s99 = sphi 0, %s98
      %s115 = sphi 0, %s99
      %s121 = sphi 0, %s123
      %s124 = sphi 0, %s121
      %s125 = sphi 0, %s124
      %s141 = sphi 0, %s125
      %s147 = sphi 0, %s149
      %s150 = sphi 0, %s147
      %s151 = sphi 0, %s150
      %s167 = sphi 0, %s151
      %s173 = sphi 0, %s175
      %s176 = sphi 0, %s173
      %s177 = sphi 0, %s176
      %s193 = sphi 0, %s177
      %s199 = sphi 0, %s201
      %s202 = sphi 0, %s199
      %s203 = sphi 0, %s202
      %s219 = sphi 0, %s203
      %s225 = sphi 0, %s227
      %s228 = sphi 0, %s225
      %s229 = sphi 0, %s228
      %s245 = sphi 0, %s229
      %s251 = sphi 0, %s253
      %s254 = sphi 0, %s251
      %s255 = sphi 0, %s254
      %s271 = sphi 0, %s255
      %s277 = sphi 0, %s279
      %s280 = sphi 0, %s277
      %s281 = sphi 0, %s280
      %s297 = sphi 0, %s281
      %s303 = sphi 0, %s305
      %s306 = sphi 0, %s303
      %s307 = sphi 0, %s306
      %s323 = sphi 0, %s307
      %s329 = sphi 0, %s331
      %s332 = sphi 0, %s329
      %s333 = sphi 0, %s332
      %s349 = sphi 0, %s333
      %s355 = sphi 0, %s357
      %s358 = sphi 0, %s355
      %s359 = sphi 0, %s358
      %s375 = sphi 0, %s359
      %s381 = sphi 0, %s383
      %s384 = sphi 0, %s381
      %s385 = sphi 0, %s384
      %s401 = sphi 0, %s385
      %s405 = sphi 0, %s405
      %s407 = sphi 0, %s405
      %s408 = sphi 0, %s407
      %s422 = sphi 0, %s408
      %s426 = sphi 0, %s426
      %s428 = sphi 0, %s426
      %s429 = sphi 0, %s428
      %s443 = sphi 0, %s429
      %s449 = sphi 0, %s451
      %s452 = sphi 0, %s449
      %s453 = sphi 0, %s452
      %s469 = sphi 0, %s453
    $region4: #{tpu_custom_call.1} parent=1 // loop_header_branch
      %29 = sbr.rel (%p27) target = $region8
    $region5: #{tpu_custom_call.1} parent=1 // loop_body
      %s31 = ssub.s32 %s26, 1
      %s32 = ssub.s32 %s26, 2
      %s39 = sadd.s32 1, %s34
      %p40 = scmp.ge.s32.totalorder %s39, 2
      %s41 = scalar_select %p40, 0, %s39
      %s42 = sadd.s32 1, %s33
      %s43 = scalar_select %p40, %s42, %s33
      %p44 = scmp.ge.s32.totalorder %s43, 1
      %s45 = scalar_select %p44, 0, %s43
      %s46 = ssub.s32 %s33, %s45
      %p47 = scmp.eq.s32.totalorder %s46, 0
      %s49 = sadd.s32 %s48, 1
      %s50 = scalar_select %p47, %s48, %s49
      %p53 = pneg %p47
      %p54 = scmp.eq.s32.totalorder %s26, 1
      %p55 = por %p53, %p54
      %p56 = scmp.ne.s32.totalorder %s48, %s51
      %p57 = scmp.eq.s32.totalorder %s26, 0
      %p58 = por %p56, %p57
      %p59 = scmp.ne.s32.totalorder %s48, %s51
      %p60 = scmp.eq.s32.totalorder %s31, 1
      %p61 = por %p59, %p60
      %p62 = scmp.ne.s32.totalorder %s51, %s52
      %p63 = scmp.eq.s32.totalorder %s31, 0
      %p64 = por %p62, %p63
      %p65 = scmp.ne.s32.totalorder %s51, %s52
      %p66 = scmp.eq.s32.totalorder %s32, 1
      %p67 = por %p65, %p66
      %p69 = scmp.ne.s32.totalorder %s52, %s68
      %p70 = scmp.eq.s32.totalorder %s32, 0
      %p71 = por %p69, %p70
      %s73 = sadd.s32 %s72, 1
      %p76 = scmp.eq.s32.totalorder %s26, 1
      %p77 = scmp.ne.s32.totalorder %s72, %s74
      %p78 = scmp.eq.s32.totalorder %s26, 0
      %p79 = por %p77, %p78
      %p80 = scmp.ne.s32.totalorder %s72, %s74
      %p81 = scmp.eq.s32.totalorder %s31, 1
      %p82 = por %p80, %p81
      %p83 = scmp.ne.s32.totalorder %s74, %s75
      %p84 = scmp.eq.s32.totalorder %s31, 0
      %p85 = por %p83, %p84
      %p86 = scmp.ne.s32.totalorder %s74, %s75
      %p87 = scmp.eq.s32.totalorder %s32, 1
      %p88 = por %p86, %p87
      %p90 = scmp.ne.s32.totalorder %s75, %s89
      %p91 = scmp.eq.s32.totalorder %s32, 0
      %p92 = por %p90, %p91
      %s93 = ssub.s32 %s34, %s41
      %p94 = scmp.eq.s32.totalorder %s93, 0
      %s96 = sadd.s32 %s95, 1
      %s97 = scalar_select %p94, %s95, %s96
      %p100 = pneg %p94
      %p101 = scmp.eq.s32.totalorder %s26, 1
      %p102 = por %p100, %p101
      %p103 = scmp.ne.s32.totalorder %s95, %s98
      %p104 = scmp.eq.s32.totalorder %s26, 0
      %p105 = por %p103, %p104
      %p106 = scmp.ne.s32.totalorder %s95, %s98
      %p107 = scmp.eq.s32.totalorder %s31, 1
      %p108 = por %p106, %p107
      %p109 = scmp.ne.s32.totalorder %s98, %s99
      %p110 = scmp.eq.s32.totalorder %s31, 0
      %p111 = por %p109, %p110
      %p112 = scmp.ne.s32.totalorder %s98, %s99
      %p113 = scmp.eq.s32.totalorder %s32, 1
      %p114 = por %p112, %p113
      %p116 = scmp.ne.s32.totalorder %s99, %s115
      %p117 = scmp.eq.s32.totalorder %s32, 0
      %p118 = por %p116, %p117
      %s119 = ssub.s32 %s34, %s41
      %p120 = scmp.eq.s32.totalorder %s119, 0
      %s122 = sadd.s32 %s121, 1
      %s123 = scalar_select %p120, %s121, %s122
      %p126 = pneg %p120
      %p127 = scmp.eq.s32.totalorder %s26, 1
      %p128 = por %p126, %p127
      %p129 = scmp.ne.s32.totalorder %s121, %s124
      %p130 = scmp.eq.s32.totalorder %s26, 0
      %p131 = por %p129, %p130
      %p132 = scmp.ne.s32.totalorder %s121, %s124
      %p133 = scmp.eq.s32.totalorder %s31, 1
      %p134 = por %p132, %p133
      %p135 = scmp.ne.s32.totalorder %s124, %s125
      %p136 = scmp.eq.s32.totalorder %s31, 0
      %p137 = por %p135, %p136
      %p138 = scmp.ne.s32.totalorder %s124, %s125
      %p139 = scmp.eq.s32.totalorder %s32, 1
      %p140 = por %p138, %p139
      %p142 = scmp.ne.s32.totalorder %s125, %s141
      %p143 = scmp.eq.s32.totalorder %s32, 0
      %p144 = por %p142, %p143
      %s145 = ssub.s32 %s34, %s41
      %p146 = scmp.eq.s32.totalorder %s145, 0
      %s148 = sadd.s32 %s147, 1
      %s149 = scalar_select %p146, %s147, %s148
      %p152 = pneg %p146
      %p153 = scmp.eq.s32.totalorder %s26, 1
      %p154 = por %p152, %p153
      %p155 = scmp.ne.s32.totalorder %s147, %s150
      %p156 = scmp.eq.s32.totalorder %s26, 0
      %p157 = por %p155, %p156
      %p158 = scmp.ne.s32.totalorder %s147, %s150
      %p159 = scmp.eq.s32.totalorder %s31, 1
      %p160 = por %p158, %p159
      %p161 = scmp.ne.s32.totalorder %s150, %s151
      %p162 = scmp.eq.s32.totalorder %s31, 0
      %p163 = por %p161, %p162
      %p164 = scmp.ne.s32.totalorder %s150, %s151
      %p165 = scmp.eq.s32.totalorder %s32, 1
      %p166 = por %p164, %p165
      %p168 = scmp.ne.s32.totalorder %s151, %s167
      %p169 = scmp.eq.s32.totalorder %s32, 0
      %p170 = por %p168, %p169
      %s171 = ssub.s32 %s34, %s41
      %p172 = scmp.eq.s32.totalorder %s171, 0
      %s174 = sadd.s32 %s173, 1
      %s175 = scalar_select %p172, %s173, %s174
      %p178 = pneg %p172
      %p179 = scmp.eq.s32.totalorder %s26, 1
      %p180 = por %p178, %p179
      %p181 = scmp.ne.s32.totalorder %s173, %s176
      %p182 = scmp.eq.s32.totalorder %s26, 0
      %p183 = por %p181, %p182
      %p184 = scmp.ne.s32.totalorder %s173, %s176
      %p185 = scmp.eq.s32.totalorder %s31, 1
      %p186 = por %p184, %p185
      %p187 = scmp.ne.s32.totalorder %s176, %s177
      %p188 = scmp.eq.s32.totalorder %s31, 0
      %p189 = por %p187, %p188
      %p190 = scmp.ne.s32.totalorder %s176, %s177
      %p191 = scmp.eq.s32.totalorder %s32, 1
      %p192 = por %p190, %p191
      %p194 = scmp.ne.s32.totalorder %s177, %s193
      %p195 = scmp.eq.s32.totalorder %s32, 0
      %p196 = por %p194, %p195
      %s197 = ssub.s32 %s34, %s41
      %p198 = scmp.eq.s32.totalorder %s197, 0
      %s200 = sadd.s32 %s199, 1
      %s201 = scalar_select %p198, %s199, %s200
      %p204 = pneg %p198
      %p205 = scmp.eq.s32.totalorder %s26, 1
      %p206 = por %p204, %p205
      %p207 = scmp.ne.s32.totalorder %s199, %s202
      %p208 = scmp.eq.s32.totalorder %s26, 0
      %p209 = por %p207, %p208
      %p210 = scmp.ne.s32.totalorder %s199, %s202
      %p211 = scmp.eq.s32.totalorder %s31, 1
      %p212 = por %p210, %p211
      %p213 = scmp.ne.s32.totalorder %s202, %s203
      %p214 = scmp.eq.s32.totalorder %s31, 0
      %p215 = por %p213, %p214
      %p216 = scmp.ne.s32.totalorder %s202, %s203
      %p217 = scmp.eq.s32.totalorder %s32, 1
      %p218 = por %p216, %p217
      %p220 = scmp.ne.s32.totalorder %s203, %s219
      %p221 = scmp.eq.s32.totalorder %s32, 0
      %p222 = por %p220, %p221
      %s223 = ssub.s32 %s34, %s41
      %p224 = scmp.eq.s32.totalorder %s223, 0
      %s226 = sadd.s32 %s225, 1
      %s227 = scalar_select %p224, %s225, %s226
      %p230 = pneg %p224
      %p231 = scmp.eq.s32.totalorder %s26, 1
      %p232 = por %p230, %p231
      %p233 = scmp.ne.s32.totalorder %s225, %s228
      %p234 = scmp.eq.s32.totalorder %s26, 0
      %p235 = por %p233, %p234
      %p236 = scmp.ne.s32.totalorder %s225, %s228
      %p237 = scmp.eq.s32.totalorder %s31, 1
      %p238 = por %p236, %p237
      %p239 = scmp.ne.s32.totalorder %s228, %s229
      %p240 = scmp.eq.s32.totalorder %s31, 0
      %p241 = por %p239, %p240
      %p242 = scmp.ne.s32.totalorder %s228, %s229
      %p243 = scmp.eq.s32.totalorder %s32, 1
      %p244 = por %p242, %p243
      %p246 = scmp.ne.s32.totalorder %s229, %s245
      %p247 = scmp.eq.s32.totalorder %s32, 0
      %p248 = por %p246, %p247
      %s249 = ssub.s32 %s34, %s41
      %p250 = scmp.eq.s32.totalorder %s249, 0
      %s252 = sadd.s32 %s251, 1
      %s253 = scalar_select %p250, %s251, %s252
      %p256 = pneg %p250
      %p257 = scmp.eq.s32.totalorder %s26, 1
      %p258 = por %p256, %p257
      %p259 = scmp.ne.s32.totalorder %s251, %s254
      %p260 = scmp.eq.s32.totalorder %s26, 0
      %p261 = por %p259, %p260
      %p262 = scmp.ne.s32.totalorder %s251, %s254
      %p263 = scmp.eq.s32.totalorder %s31, 1
      %p264 = por %p262, %p263
      %p265 = scmp.ne.s32.totalorder %s254, %s255
      %p266 = scmp.eq.s32.totalorder %s31, 0
      %p267 = por %p265, %p266
      %p268 = scmp.ne.s32.totalorder %s254, %s255
      %p269 = scmp.eq.s32.totalorder %s32, 1
      %p270 = por %p268, %p269
      %p272 = scmp.ne.s32.totalorder %s255, %s271
      %p273 = scmp.eq.s32.totalorder %s32, 0
      %p274 = por %p272, %p273
      %s275 = ssub.s32 %s34, %s41
      %p276 = scmp.eq.s32.totalorder %s275, 0
      %s278 = sadd.s32 %s277, 1
      %s279 = scalar_select %p276, %s277, %s278
      %p282 = pneg %p276
      %p283 = scmp.eq.s32.totalorder %s26, 1
      %p284 = por %p282, %p283
      %p285 = scmp.ne.s32.totalorder %s277, %s280
      %p286 = scmp.eq.s32.totalorder %s26, 0
      %p287 = por %p285, %p286
      %p288 = scmp.ne.s32.totalorder %s277, %s280
      %p289 = scmp.eq.s32.totalorder %s31, 1
      %p290 = por %p288, %p289
      %p291 = scmp.ne.s32.totalorder %s280, %s281
      %p292 = scmp.eq.s32.totalorder %s31, 0
      %p293 = por %p291, %p292
      %p294 = scmp.ne.s32.totalorder %s280, %s281
      %p295 = scmp.eq.s32.totalorder %s32, 1
      %p296 = por %p294, %p295
      %p298 = scmp.ne.s32.totalorder %s281, %s297
      %p299 = scmp.eq.s32.totalorder %s32, 0
      %p300 = por %p298, %p299
      %s301 = ssub.s32 %s34, %s41
      %p302 = scmp.eq.s32.totalorder %s301, 0
      %s304 = sadd.s32 %s303, 1
      %s305 = scalar_select %p302, %s303, %s304
      %p308 = pneg %p302
      %p309 = scmp.eq.s32.totalorder %s26, 1
      %p310 = por %p308, %p309
      %p311 = scmp.ne.s32.totalorder %s303, %s306
      %p312 = scmp.eq.s32.totalorder %s26, 0
      %p313 = por %p311, %p312
      %p314 = scmp.ne.s32.totalorder %s303, %s306
      %p315 = scmp.eq.s32.totalorder %s31, 1
      %p316 = por %p314, %p315
      %p317 = scmp.ne.s32.totalorder %s306, %s307
      %p318 = scmp.eq.s32.totalorder %s31, 0
      %p319 = por %p317, %p318
      %p320 = scmp.ne.s32.totalorder %s306, %s307
      %p321 = scmp.eq.s32.totalorder %s32, 1
      %p322 = por %p320, %p321
      %p324 = scmp.ne.s32.totalorder %s307, %s323
      %p325 = scmp.eq.s32.totalorder %s32, 0
      %p326 = por %p324, %p325
      %s327 = ssub.s32 %s34, %s41
      %p328 = scmp.eq.s32.totalorder %s327, 0
      %s330 = sadd.s32 %s329, 1
      %s331 = scalar_select %p328, %s329, %s330
      %p334 = pneg %p328
      %p335 = scmp.eq.s32.totalorder %s26, 1
      %p336 = por %p334, %p335
      %p337 = scmp.ne.s32.totalorder %s329, %s332
      %p338 = scmp.eq.s32.totalorder %s26, 0
      %p339 = por %p337, %p338
      %p340 = scmp.ne.s32.totalorder %s329, %s332
      %p341 = scmp.eq.s32.totalorder %s31, 1
      %p342 = por %p340, %p341
      %p343 = scmp.ne.s32.totalorder %s332, %s333
      %p344 = scmp.eq.s32.totalorder %s31, 0
      %p345 = por %p343, %p344
      %p346 = scmp.ne.s32.totalorder %s332, %s333
      %p347 = scmp.eq.s32.totalorder %s32, 1
      %p348 = por %p346, %p347
      %p350 = scmp.ne.s32.totalorder %s333, %s349
      %p351 = scmp.eq.s32.totalorder %s32, 0
      %p352 = por %p350, %p351
      %s353 = ssub.s32 %s34, %s41
      %p354 = scmp.eq.s32.totalorder %s353, 0
      %s356 = sadd.s32 %s355, 1
      %s357 = scalar_select %p354, %s355, %s356
      %p360 = pneg %p354
      %p361 = scmp.eq.s32.totalorder %s26, 1
      %p362 = por %p360, %p361
      %p363 = scmp.ne.s32.totalorder %s355, %s358
      %p364 = scmp.eq.s32.totalorder %s26, 0
      %p365 = por %p363, %p364
      %p366 = scmp.ne.s32.totalorder %s355, %s358
      %p367 = scmp.eq.s32.totalorder %s31, 1
      %p368 = por %p366, %p367
      %p369 = scmp.ne.s32.totalorder %s358, %s359
      %p370 = scmp.eq.s32.totalorder %s31, 0
      %p371 = por %p369, %p370
      %p372 = scmp.ne.s32.totalorder %s358, %s359
      %p373 = scmp.eq.s32.totalorder %s32, 1
      %p374 = por %p372, %p373
      %p376 = scmp.ne.s32.totalorder %s359, %s375
      %p377 = scmp.eq.s32.totalorder %s32, 0
      %p378 = por %p376, %p377
      %s379 = ssub.s32 %s34, %s41
      %p380 = scmp.eq.s32.totalorder %s379, 0
      %s382 = sadd.s32 %s381, 1
      %s383 = scalar_select %p380, %s381, %s382
      %p386 = pneg %p380
      %p387 = scmp.eq.s32.totalorder %s26, 1
      %p388 = por %p386, %p387
      %p389 = scmp.ne.s32.totalorder %s381, %s384
      %p390 = scmp.eq.s32.totalorder %s26, 0
      %p391 = por %p389, %p390
      %p392 = scmp.ne.s32.totalorder %s381, %s384
      %p393 = scmp.eq.s32.totalorder %s31, 1
      %p394 = por %p392, %p393
      %p395 = scmp.ne.s32.totalorder %s384, %s385
      %p396 = scmp.eq.s32.totalorder %s31, 0
      %p397 = por %p395, %p396
      %p398 = scmp.ne.s32.totalorder %s384, %s385
      %p399 = scmp.eq.s32.totalorder %s32, 1
      %p400 = por %p398, %p399
      %p402 = scmp.ne.s32.totalorder %s385, %s401
      %p403 = scmp.eq.s32.totalorder %s32, 0
      %p404 = por %p402, %p403
      %s406 = sadd.s32 %s405, 1
      %p409 = scmp.eq.s32.totalorder %s26, 1
      %p410 = scmp.ne.s32.totalorder %s405, %s407
      %p411 = scmp.eq.s32.totalorder %s26, 0
      %p412 = por %p410, %p411
      %p413 = scmp.ne.s32.totalorder %s405, %s407
      %p414 = scmp.eq.s32.totalorder %s31, 1
      %p415 = por %p413, %p414
      %p416 = scmp.ne.s32.totalorder %s407, %s408
      %p417 = scmp.eq.s32.totalorder %s31, 0
      %p418 = por %p416, %p417
      %p419 = scmp.ne.s32.totalorder %s407, %s408
      %p420 = scmp.eq.s32.totalorder %s32, 1
      %p421 = por %p419, %p420
      %p423 = scmp.ne.s32.totalorder %s408, %s422
      %p424 = scmp.eq.s32.totalorder %s32, 0
      %p425 = por %p423, %p424
      %s427 = sadd.s32 %s426, 1
      %p430 = scmp.eq.s32.totalorder %s26, 1
      %p431 = scmp.ne.s32.totalorder %s426, %s428
      %p432 = scmp.eq.s32.totalorder %s26, 0
      %p433 = por %p431, %p432
      %p434 = scmp.ne.s32.totalorder %s426, %s428
      %p435 = scmp.eq.s32.totalorder %s31, 1
      %p436 = por %p434, %p435
      %p437 = scmp.ne.s32.totalorder %s428, %s429
      %p438 = scmp.eq.s32.totalorder %s31, 0
      %p439 = por %p437, %p438
      %p440 = scmp.ne.s32.totalorder %s428, %s429
      %p441 = scmp.eq.s32.totalorder %s32, 1
      %p442 = por %p440, %p441
      %p444 = scmp.ne.s32.totalorder %s429, %s443
      %p445 = scmp.eq.s32.totalorder %s32, 0
      %p446 = por %p444, %p445
      %s447 = ssub.s32 %s33, %s45
      %p448 = scmp.eq.s32.totalorder %s447, 0
      %s450 = sadd.s32 %s449, 1
      %s451 = scalar_select %p448, %s449, %s450
      %p454 = pneg %p448
      %p455 = scmp.eq.s32.totalorder %s26, 1
      %p456 = por %p454, %p455
      %p457 = scmp.ne.s32.totalorder %s449, %s452
      %p458 = scmp.eq.s32.totalorder %s26, 0
      %p459 = por %p457, %p458
      %p460 = scmp.ne.s32.totalorder %s449, %s452
      %p461 = scmp.eq.s32.totalorder %s31, 1
      %p462 = por %p460, %p461
      %p463 = scmp.ne.s32.totalorder %s452, %s453
      %p464 = scmp.eq.s32.totalorder %s31, 0
      %p465 = por %p463, %p464
      %p466 = scmp.ne.s32.totalorder %s452, %s453
      %p467 = scmp.eq.s32.totalorder %s32, 1
      %p468 = por %p466, %p467
      %p470 = scmp.ne.s32.totalorder %s453, %s469
      %p471 = scmp.eq.s32.totalorder %s32, 0
      %p472 = por %p470, %p471
      %p473 = scmp.le.s32.totalorder 1, %s26
      %p474 = scmp.lt.s32.totalorder %s26, 3
      %p475 = pnand %p473, %p474
      %p476 = pneg %p475
      // Predicated region
      $region9: #{tpu_custom_call.1} parent=5 // pred_check
        _
      $region10: #{tpu_custom_call.1} parent=5 // pred_check_branch
        %478 = sbr.rel (%p475) target = $region12
      $region11: #{tpu_custom_call.1} parent=5 // pred_region
        %s479 = ssub.s32 %s26, 1
        // Predicated region
        $region13: #{tpu_custom_call.1} parent=11 // pred_check
          %p480 = pneg %p64
        $region14: #{tpu_custom_call.1} parent=11 // pred_check_branch
          %482 = sbr.rel (%p480) target = $region16
        $region15: #{tpu_custom_call.1} parent=11 // pred_region
          %s483 = smul.u32 2, %s35
          %s485 = ssub.s32 256, 256
          %486 = vsyncadd [#allocation4], %s485
          %s487 = smul.addr %s483, 128
          %s488 = scalar_lea.hbm %s0, %s487
          %s489 = sshll.u32 [#allocation3], 4
          %s490 = int_to_ptr.vmem [resolvable:$true] %s489
          %495 = dma.hbm_to_vmem [thread:$0]  %s488, 256, %s490, [#allocation4], 128, 128, 8
        $region16: #{tpu_custom_call.1} parent=11 // pred_fallthru
          _
        // Predicated region
        $region17: #{tpu_custom_call.1} parent=11 // pred_check
          %p496 = pneg %p85
        $region18: #{tpu_custom_call.1} parent=11 // pred_check_branch
          %498 = sbr.rel (%p496) target = $region20
        $region19: #{tpu_custom_call.1} parent=11 // pred_region
          %s500 = ssub.s32 128, 128
          %501 = vsyncadd [#allocation7], %s500
          %s503 = sshll.u32 [#allocation6], 4
          %s504 = int_to_ptr.vmem [resolvable:$true] %s503
          %506 = dma.hbm_to_vmem [thread:$0]  %s1, 128, %s504, [#allocation7]
        $region20: #{tpu_custom_call.1} parent=11 // pred_fallthru
          _
        // Predicated region
        $region21: #{tpu_custom_call.1} parent=11 // pred_check
          %p507 = pneg %p418
        $region22: #{tpu_custom_call.1} parent=11 // pred_check_branch
          %509 = sbr.rel (%p507) target = $region24
        $region23: #{tpu_custom_call.1} parent=11 // pred_region
          %s511 = ssub.s32 16, 16
          %512 = vsyncadd [#allocation7], %s511
          %s514 = sshll.u32 [#allocation20], 4
          %s515 = int_to_ptr.vmem [resolvable:$true] %s514
          %517 = dma.hbm_to_vmem [thread:$0]  %s14, 16, %s515, [#allocation7]
        $region24: #{tpu_custom_call.1} parent=11 // pred_fallthru
          _
        // Predicated region
        $region25: #{tpu_custom_call.1} parent=11 // pred_check
          %p518 = pneg %p439
        $region26: #{tpu_custom_call.1} parent=11 // pred_check_branch
          %520 = sbr.rel (%p518) target = $region28
        $region27: #{tpu_custom_call.1} parent=11 // pred_region
          %s522 = ssub.s32 16, 16
          %523 = vsyncadd [#allocation22], %s522
          %s525 = sshll.u32 [#allocation21], 4
          %s526 = int_to_ptr.vmem [resolvable:$true] %s525
          %528 = dma.hbm_to_vmem [thread:$0]  %s15, 16, %s526, [#allocation22]
        $region28: #{tpu_custom_call.1} parent=11 // pred_fallthru
          _
      $region12: #{tpu_custom_call.1} parent=5 // pred_fallthru
        _
      %p529 = scmp.lt.s32.totalorder %s26, 2
      // Predicated region
      $region29: #{tpu_custom_call.1} parent=5 // pred_check
        %p530 = pneg %p529
      $region30: #{tpu_custom_call.1} parent=5 // pred_check_branch
        %532 = sbr.rel (%p530) target = $region32
      $region31: #{tpu_custom_call.1} parent=5 // pred_region
        // Predicated region
        $region33: #{tpu_custom_call.1} parent=31 // pred_check
          %p533 = pneg %p105
        $region34: #{tpu_custom_call.1} parent=31 // pred_check_branch
          %535 = sbr.rel (%p533) target = $region36
        $region35: #{tpu_custom_call.1} parent=31 // pred_region
          %s536 = sand.u32 %s26, 1
          %s537 = scalar_lea.sflag [#allocation4], %s536
          %s538 = sand.u32 %s95, 1
          %s539 = scalar_lea.vmem [#allocation8], %s538
          %s541 = ssub.s32 16, 16
          %542 = vsyncadd %s537, %s541
          %s543 = smul.addr %s34, 16
          %s544 = scalar_lea.hbm %s2, %s543
          %s546 = sshll.u32 %s539, 4
          %s547 = int_to_ptr.vmem [resolvable:$true] %s546
          %549 = dma.hbm_to_vmem [thread:$0]  %s544, 16, %s547, %s537
        $region36: #{tpu_custom_call.1} parent=31 // pred_fallthru
          _
        // Predicated region
        $region37: #{tpu_custom_call.1} parent=31 // pred_check
          %p550 = pneg %p131
        $region38: #{tpu_custom_call.1} parent=31 // pred_check_branch
          %552 = sbr.rel (%p550) target = $region40
        $region39: #{tpu_custom_call.1} parent=31 // pred_region
          %s553 = sand.u32 %s26, 1
          %s554 = scalar_lea.sflag [#allocation4], %s553
          %s555 = sand.u32 %s121, 1
          %s556 = scalar_lea.vmem [#allocation9], %s555
          %s558 = ssub.s32 16, 16
          %559 = vsyncadd %s554, %s558
          %s560 = smul.addr %s34, 16
          %s561 = scalar_lea.hbm %s3, %s560
          %s563 = sshll.u32 %s556, 4
          %s564 = int_to_ptr.vmem [resolvable:$true] %s563
          %566 = dma.hbm_to_vmem [thread:$0]  %s561, 16, %s564, %s554
        $region40: #{tpu_custom_call.1} parent=31 // pred_fallthru
          _
        // Predicated region
        $region41: #{tpu_custom_call.1} parent=31 // pred_check
          %p567 = pneg %p157
        $region42: #{tpu_custom_call.1} parent=31 // pred_check_branch
          %569 = sbr.rel (%p567) target = $region44
        $region43: #{tpu_custom_call.1} parent=31 // pred_region
          %s570 = sand.u32 %s26, 1
          %s571 = scalar_lea.sflag [#allocation4], %s570
          %s572 = sand.u32 %s147, 1
          %s573 = smul.addr %s572, 16
          %s574 = scalar_lea.vmem [#allocation10], %s573
          %s576 = ssub.s32 256, 256
          %577 = vsyncadd %s571, %s576
          %s578 = smul.addr %s34, 4
          %s579 = smul.addr %s578, 64
          %s580 = scalar_lea.hbm %s4, %s579
          %s581 = sshll.u32 %s574, 4
          %s582 = int_to_ptr.vmem [resolvable:$true] %s581
          %587 = dma.hbm_to_vmem [thread:$0]  %s580, 256, %s582, %s571, 64, 64, 4
        $region44: #{tpu_custom_call.1} parent=31 // pred_fallthru
          _
        // Predicated region
        $region45: #{tpu_custom_call.1} parent=31 // pred_check
          %p588 = pneg %p183
        $region46: #{tpu_custom_call.1} parent=31 // pred_check_branch
          %590 = sbr.rel (%p588) target = $region48
        $region47: #{tpu_custom_call.1} parent=31 // pred_region
          %s591 = sand.u32 %s26, 1
          %s592 = scalar_lea.sflag [#allocation4], %s591
          %s593 = sand.u32 %s173, 1
          %s594 = scalar_lea.vmem [#allocation11], %s593
          %s596 = ssub.s32 16, 16
          %597 = vsyncadd %s592, %s596
          %s598 = smul.addr %s34, 16
          %s599 = scalar_lea.hbm %s5, %s598
          %s601 = sshll.u32 %s594, 4
          %s602 = int_to_ptr.vmem [resolvable:$true] %s601
          %604 = dma.hbm_to_vmem [thread:$0]  %s599, 16, %s602, %s592
        $region48: #{tpu_custom_call.1} parent=31 // pred_fallthru
          _
        // Predicated region
        $region49: #{tpu_custom_call.1} parent=31 // pred_check
          %p605 = pneg %p209
        $region50: #{tpu_custom_call.1} parent=31 // pred_check_branch
          %607 = sbr.rel (%p605) target = $region52
        $region51: #{tpu_custom_call.1} parent=31 // pred_region
          %s608 = sand.u32 %s26, 1
          %s609 = scalar_lea.sflag [#allocation4], %s608
          %s610 = sand.u32 %s199, 1
          %s611 = smul.addr %s610, 16
          %s612 = scalar_lea.vmem [#allocation12], %s611
          %s614 = ssub.s32 256, 256
          %615 = vsyncadd %s609, %s614
          %s616 = smul.addr %s34, 4
          %s617 = smul.addr %s616, 64
          %s618 = scalar_lea.hbm %s6, %s617
          %s619 = sshll.u32 %s612, 4
          %s620 = int_to_ptr.vmem [resolvable:$true] %s619
          %625 = dma.hbm_to_vmem [thread:$0]  %s618, 256, %s620, %s609, 64, 64, 4
        $region52: #{tpu_custom_call.1} parent=31 // pred_fallthru
          _
        // Predicated region
        $region53: #{tpu_custom_call.1} parent=31 // pred_check
          %p626 = pneg %p235
        $region54: #{tpu_custom_call.1} parent=31 // pred_check_branch
          %628 = sbr.rel (%p626) target = $region56
        $region55: #{tpu_custom_call.1} parent=31 // pred_region
          %s629 = sand.u32 %s26, 1
          %s630 = scalar_lea.sflag [#allocation4], %s629
          %s631 = sand.u32 %s225, 1
          %s632 = scalar_lea.vmem [#allocation13], %s631
          %s634 = ssub.s32 16, 16
          %635 = vsyncadd %s630, %s634
          %s636 = smul.addr %s34, 16
          %s637 = scalar_lea.hbm %s7, %s636
          %s639 = sshll.u32 %s632, 4
          %s640 = int_to_ptr.vmem [resolvable:$true] %s639
          %642 = dma.hbm_to_vmem [thread:$0]  %s637, 16, %s640, %s630
        $region56: #{tpu_custom_call.1} parent=31 // pred_fallthru
          _
        // Predicated region
        $region57: #{tpu_custom_call.1} parent=31 // pred_check
          %p643 = pneg %p261
        $region58: #{tpu_custom_call.1} parent=31 // pred_check_branch
          %645 = sbr.rel (%p643) target = $region60
        $region59: #{tpu_custom_call.1} parent=31 // pred_region
          %s646 = sand.u32 %s26, 1
          %s647 = scalar_lea.sflag [#allocation4], %s646
          %s648 = sand.u32 %s251, 1
          %s649 = scalar_lea.vmem [#allocation14], %s648
          %s651 = ssub.s32 16, 16
          %652 = vsyncadd %s647, %s651
          %s653 = smul.addr %s34, 16
          %s654 = scalar_lea.hbm %s8, %s653
          %s656 = sshll.u32 %s649, 4
          %s657 = int_to_ptr.vmem [resolvable:$true] %s656
          %659 = dma.hbm_to_vmem [thread:$0]  %s654, 16, %s657, %s647
        $region60: #{tpu_custom_call.1} parent=31 // pred_fallthru
          _
        // Predicated region
        $region61: #{tpu_custom_call.1} parent=31 // pred_check
          %p660 = pneg %p287
        $region62: #{tpu_custom_call.1} parent=31 // pred_check_branch
          %662 = sbr.rel (%p660) target = $region64
        $region63: #{tpu_custom_call.1} parent=31 // pred_region
          %s663 = sand.u32 %s26, 1
          %s664 = scalar_lea.sflag [#allocation4], %s663
          %s665 = sand.u32 %s277, 1
          %s666 = scalar_lea.vmem [#allocation15], %s665
          %s668 = ssub.s32 16, 16
          %669 = vsyncadd %s664, %s668
          %s670 = smul.addr %s34, 16
          %s671 = scalar_lea.hbm %s9, %s670
          %s673 = sshll.u32 %s666, 4
          %s674 = int_to_ptr.vmem [resolvable:$true] %s673
          %676 = dma.hbm_to_vmem [thread:$0]  %s671, 16, %s674, %s664
        $region64: #{tpu_custom_call.1} parent=31 // pred_fallthru
          _
        // Predicated region
        $region65: #{tpu_custom_call.1} parent=31 // pred_check
          %p677 = pneg %p313
        $region66: #{tpu_custom_call.1} parent=31 // pred_check_branch
          %679 = sbr.rel (%p677) target = $region68
        $region67: #{tpu_custom_call.1} parent=31 // pred_region
          %s680 = sand.u32 %s26, 1
          %s681 = scalar_lea.sflag [#allocation4], %s680
          %s682 = sand.u32 %s303, 1
          %s683 = smul.addr %s682, 16
          %s684 = scalar_lea.vmem [#allocation16], %s683
          %s686 = ssub.s32 256, 256
          %687 = vsyncadd %s681, %s686
          %s688 = smul.addr %s34, 4
          %s689 = smul.addr %s688, 64
          %s690 = scalar_lea.hbm %s10, %s689
          %s691 = sshll.u32 %s684, 4
          %s692 = int_to_ptr.vmem [resolvable:$true] %s691
          %697 = dma.hbm_to_vmem [thread:$0]  %s690, 256, %s692, %s681, 64, 64, 4
        $region68: #{tpu_custom_call.1} parent=31 // pred_fallthru
          _
        // Predicated region
        $region69: #{tpu_custom_call.1} parent=31 // pred_check
          %p698 = pneg %p339
        $region70: #{tpu_custom_call.1} parent=31 // pred_check_branch
          %700 = sbr.rel (%p698) target = $region72
        $region71: #{tpu_custom_call.1} parent=31 // pred_region
          %s701 = sand.u32 %s26, 1
          %s702 = scalar_lea.sflag [#allocation4], %s701
          %s703 = sand.u32 %s329, 1
          %s704 = scalar_lea.vmem [#allocation17], %s703
          %s706 = ssub.s32 16, 16
          %707 = vsyncadd %s702, %s706
          %s708 = smul.addr %s34, 16
          %s709 = scalar_lea.hbm %s11, %s708
          %s711 = sshll.u32 %s704, 4
          %s712 = int_to_ptr.vmem [resolvable:$true] %s711
          %714 = dma.hbm_to_vmem [thread:$0]  %s709, 16, %s712, %s702
        $region72: #{tpu_custom_call.1} parent=31 // pred_fallthru
          _
        // Predicated region
        $region73: #{tpu_custom_call.1} parent=31 // pred_check
          %p715 = pneg %p365
        $region74: #{tpu_custom_call.1} parent=31 // pred_check_branch
          %717 = sbr.rel (%p715) target = $region76
        $region75: #{tpu_custom_call.1} parent=31 // pred_region
          %s718 = sand.u32 %s26, 1
          %s719 = scalar_lea.sflag [#allocation4], %s718
          %s720 = sand.u32 %s355, 1
          %s721 = smul.addr %s720, 16
          %s722 = scalar_lea.vmem [#allocation18], %s721
          %s724 = ssub.s32 256, 256
          %725 = vsyncadd %s719, %s724
          %s726 = smul.addr %s34, 4
          %s727 = smul.addr %s726, 64
          %s728 = scalar_lea.hbm %s12, %s727
          %s729 = sshll.u32 %s722, 4
          %s730 = int_to_ptr.vmem [resolvable:$true] %s729
          %735 = dma.hbm_to_vmem [thread:$0]  %s728, 256, %s730, %s719, 64, 64, 4
        $region76: #{tpu_custom_call.1} parent=31 // pred_fallthru
          _
        // Predicated region
        $region77: #{tpu_custom_call.1} parent=31 // pred_check
          %p736 = pneg %p391
        $region78: #{tpu_custom_call.1} parent=31 // pred_check_branch
          %738 = sbr.rel (%p736) target = $region80
        $region79: #{tpu_custom_call.1} parent=31 // pred_region
          %s739 = sand.u32 %s26, 1
          %s740 = scalar_lea.sflag [#allocation4], %s739
          %s741 = sand.u32 %s381, 1
          %s742 = scalar_lea.vmem [#allocation19], %s741
          %s744 = ssub.s32 16, 16
          %745 = vsyncadd %s740, %s744
          %s746 = smul.addr %s34, 16
          %s747 = scalar_lea.hbm %s13, %s746
          %s749 = sshll.u32 %s742, 4
          %s750 = int_to_ptr.vmem [resolvable:$true] %s749
          %752 = dma.hbm_to_vmem [thread:$0]  %s747, 16, %s750, %s740
        $region80: #{tpu_custom_call.1} parent=31 // pred_fallthru
          _
      $region32: #{tpu_custom_call.1} parent=5 // pred_fallthru
        _
      %p753 = scmp.le.s32.totalorder 1, %s26
      %p754 = scmp.lt.s32.totalorder %s26, 3
      %p755 = pnand %p753, %p754
      %p756 = pneg %p755
      // Predicated region
      $region81: #{tpu_custom_call.1} parent=5 // pred_check
        _
      $region82: #{tpu_custom_call.1} parent=5 // pred_check_branch
        %758 = sbr.rel (%p755) target = $region84
      $region83: #{tpu_custom_call.1} parent=5 // pred_region
        %s759 = ssub.s32 %s26, 1
        // Predicated region
        $region85: #{tpu_custom_call.1} parent=83 // pred_check
          %p760 = pneg %p64
        $region86: #{tpu_custom_call.1} parent=83 // pred_check_branch
          %762 = sbr.rel (%p760) target = $region88
        $region87: #{tpu_custom_call.1} parent=83 // pred_region
          %763 = dma.done [#allocation4], 256
        $region88: #{tpu_custom_call.1} parent=83 // pred_fallthru
          _
        // Predicated region
        $region89: #{tpu_custom_call.1} parent=83 // pred_check
          %p764 = pneg %p85
        $region90: #{tpu_custom_call.1} parent=83 // pred_check_branch
          %766 = sbr.rel (%p764) target = $region92
        $region91: #{tpu_custom_call.1} parent=83 // pred_region
          %767 = dma.done [#allocation7], 128
        $region92: #{tpu_custom_call.1} parent=83 // pred_fallthru
          _
        %s768 = sand.u32 %s31, 1
        %s769 = scalar_lea.sflag [#allocation4], %s768
        %s770 = sand.u32 %s98, 1
        %s771 = scalar_lea.vmem [#allocation8], %s770
        // Predicated region
        $region93: #{tpu_custom_call.1} parent=83 // pred_check
          %p772 = pneg %p111
        $region94: #{tpu_custom_call.1} parent=83 // pred_check_branch
          %774 = sbr.rel (%p772) target = $region96
        $region95: #{tpu_custom_call.1} parent=83 // pred_region
          %775 = dma.done %s769, 16
        $region96: #{tpu_custom_call.1} parent=83 // pred_fallthru
          _
        %s776 = sand.u32 %s31, 1
        %s777 = scalar_lea.sflag [#allocation4], %s776
        %s778 = sand.u32 %s124, 1
        %s779 = scalar_lea.vmem [#allocation9], %s778
        // Predicated region
        $region97: #{tpu_custom_call.1} parent=83 // pred_check
          %p780 = pneg %p137
        $region98: #{tpu_custom_call.1} parent=83 // pred_check_branch
          %782 = sbr.rel (%p780) target = $region100
        $region99: #{tpu_custom_call.1} parent=83 // pred_region
          %783 = dma.done %s777, 16
        $region100: #{tpu_custom_call.1} parent=83 // pred_fallthru
          _
        %s784 = sand.u32 %s31, 1
        %s785 = scalar_lea.sflag [#allocation4], %s784
        %s786 = sand.u32 %s150, 1
        %s787 = smul.addr %s786, 16
        %s788 = scalar_lea.vmem [#allocation10], %s787
        // Predicated region
        $region101: #{tpu_custom_call.1} parent=83 // pred_check
          %p789 = pneg %p163
        $region102: #{tpu_custom_call.1} parent=83 // pred_check_branch
          %791 = sbr.rel (%p789) target = $region104
        $region103: #{tpu_custom_call.1} parent=83 // pred_region
          %792 = dma.done %s785, 256
        $region104: #{tpu_custom_call.1} parent=83 // pred_fallthru
          _
        %s793 = sand.u32 %s31, 1
        %s794 = scalar_lea.sflag [#allocation4], %s793
        %s795 = sand.u32 %s176, 1
        %s796 = scalar_lea.vmem [#allocation11], %s795
        // Predicated region
        $region105: #{tpu_custom_call.1} parent=83 // pred_check
          %p797 = pneg %p189
        $region106: #{tpu_custom_call.1} parent=83 // pred_check_branch
          %799 = sbr.rel (%p797) target = $region108
        $region107: #{tpu_custom_call.1} parent=83 // pred_region
          %800 = dma.done %s794, 16
        $region108: #{tpu_custom_call.1} parent=83 // pred_fallthru
          _
        %s801 = sand.u32 %s31, 1
        %s802 = scalar_lea.sflag [#allocation4], %s801
        %s803 = sand.u32 %s202, 1
        %s804 = smul.addr %s803, 16
        %s805 = scalar_lea.vmem [#allocation12], %s804
        // Predicated region
        $region109: #{tpu_custom_call.1} parent=83 // pred_check
          %p806 = pneg %p215
        $region110: #{tpu_custom_call.1} parent=83 // pred_check_branch
          %808 = sbr.rel (%p806) target = $region112
        $region111: #{tpu_custom_call.1} parent=83 // pred_region
          %809 = dma.done %s802, 256
        $region112: #{tpu_custom_call.1} parent=83 // pred_fallthru
          _
        %s810 = sand.u32 %s31, 1
        %s811 = scalar_lea.sflag [#allocation4], %s810
        %s812 = sand.u32 %s228, 1
        %s813 = scalar_lea.vmem [#allocation13], %s812
        // Predicated region
        $region113: #{tpu_custom_call.1} parent=83 // pred_check
          %p814 = pneg %p241
        $region114: #{tpu_custom_call.1} parent=83 // pred_check_branch
          %816 = sbr.rel (%p814) target = $region116
        $region115: #{tpu_custom_call.1} parent=83 // pred_region
          %817 = dma.done %s811, 16
        $region116: #{tpu_custom_call.1} parent=83 // pred_fallthru
          _
        %s818 = sand.u32 %s31, 1
        %s819 = scalar_lea.sflag [#allocation4], %s818
        %s820 = sand.u32 %s254, 1
        %s821 = scalar_lea.vmem [#allocation14], %s820
        // Predicated region
        $region117: #{tpu_custom_call.1} parent=83 // pred_check
          %p822 = pneg %p267
        $region118: #{tpu_custom_call.1} parent=83 // pred_check_branch
          %824 = sbr.rel (%p822) target = $region120
        $region119: #{tpu_custom_call.1} parent=83 // pred_region
          %825 = dma.done %s819, 16
        $region120: #{tpu_custom_call.1} parent=83 // pred_fallthru
          _
        %s826 = sand.u32 %s31, 1
        %s827 = scalar_lea.sflag [#allocation4], %s826
        %s828 = sand.u32 %s280, 1
        %s829 = scalar_lea.vmem [#allocation15], %s828
        // Predicated region
        $region121: #{tpu_custom_call.1} parent=83 // pred_check
          %p830 = pneg %p293
        $region122: #{tpu_custom_call.1} parent=83 // pred_check_branch
          %832 = sbr.rel (%p830) target = $region124
        $region123: #{tpu_custom_call.1} parent=83 // pred_region
          %833 = dma.done %s827, 16
        $region124: #{tpu_custom_call.1} parent=83 // pred_fallthru
          _
        %s834 = sand.u32 %s31, 1
        %s835 = scalar_lea.sflag [#allocation4], %s834
        %s836 = sand.u32 %s306, 1
        %s837 = smul.addr %s836, 16
        %s838 = scalar_lea.vmem [#allocation16], %s837
        // Predicated region
        $region125: #{tpu_custom_call.1} parent=83 // pred_check
          %p839 = pneg %p319
        $region126: #{tpu_custom_call.1} parent=83 // pred_check_branch
          %841 = sbr.rel (%p839) target = $region128
        $region127: #{tpu_custom_call.1} parent=83 // pred_region
          %842 = dma.done %s835, 256
        $region128: #{tpu_custom_call.1} parent=83 // pred_fallthru
          _
        %s843 = sand.u32 %s31, 1
        %s844 = scalar_lea.sflag [#allocation4], %s843
        %s845 = sand.u32 %s332, 1
        %s846 = scalar_lea.vmem [#allocation17], %s845
        // Predicated region
        $region129: #{tpu_custom_call.1} parent=83 // pred_check
          %p847 = pneg %p345
        $region130: #{tpu_custom_call.1} parent=83 // pred_check_branch
          %849 = sbr.rel (%p847) target = $region132
        $region131: #{tpu_custom_call.1} parent=83 // pred_region
          %850 = dma.done %s844, 16
        $region132: #{tpu_custom_call.1} parent=83 // pred_fallthru
          _
        %s851 = sand.u32 %s31, 1
        %s852 = scalar_lea.sflag [#allocation4], %s851
        %s853 = sand.u32 %s358, 1
        %s854 = smul.addr %s853, 16
        %s855 = scalar_lea.vmem [#allocation18], %s854
        // Predicated region
        $region133: #{tpu_custom_call.1} parent=83 // pred_check
          %p856 = pneg %p371
        $region134: #{tpu_custom_call.1} parent=83 // pred_check_branch
          %858 = sbr.rel (%p856) target = $region136
        $region135: #{tpu_custom_call.1} parent=83 // pred_region
          %859 = dma.done %s852, 256
        $region136: #{tpu_custom_call.1} parent=83 // pred_fallthru
          _
        %s860 = sand.u32 %s31, 1
        %s861 = scalar_lea.sflag [#allocation4], %s860
        %s862 = sand.u32 %s384, 1
        %s863 = scalar_lea.vmem [#allocation19], %s862
        // Predicated region
        $region137: #{tpu_custom_call.1} parent=83 // pred_check
          %p864 = pneg %p397
        $region138: #{tpu_custom_call.1} parent=83 // pred_check_branch
          %866 = sbr.rel (%p864) target = $region140
        $region139: #{tpu_custom_call.1} parent=83 // pred_region
          %867 = dma.done %s861, 16
        $region140: #{tpu_custom_call.1} parent=83 // pred_fallthru
          _
        // Predicated region
        $region141: #{tpu_custom_call.1} parent=83 // pred_check
          %p868 = pneg %p418
        $region142: #{tpu_custom_call.1} parent=83 // pred_check_branch
          %870 = sbr.rel (%p868) target = $region144
        $region143: #{tpu_custom_call.1} parent=83 // pred_region
          %871 = dma.done [#allocation7], 16
        $region144: #{tpu_custom_call.1} parent=83 // pred_fallthru
          _
        // Predicated region
        $region145: #{tpu_custom_call.1} parent=83 // pred_check
          %p872 = pneg %p439
        $region146: #{tpu_custom_call.1} parent=83 // pred_check_branch
          %874 = sbr.rel (%p872) target = $region148
        $region147: #{tpu_custom_call.1} parent=83 // pred_region
          %875 = dma.done [#allocation22], 16
        $region148: #{tpu_custom_call.1} parent=83 // pred_fallthru
          _
        %p876 = pneg %p64
        %p877 = pneg %p61
        %p878 = pneg %p85
        %p879 = pneg %p82
        %s880 = sand.u32 %s31, 1
        %s881 = scalar_lea.sflag [#allocation4], %s880
        %s882 = sand.u32 %s98, 1
        %s883 = scalar_lea.vmem [#allocation8], %s882
        %p884 = pneg %p111
        %p885 = pneg %p108
        %s886 = sand.u32 %s31, 1
        %s887 = scalar_lea.sflag [#allocation4], %s886
        %s888 = sand.u32 %s124, 1
        %s889 = scalar_lea.vmem [#allocation9], %s888
        %p890 = pneg %p137
        %p891 = pneg %p134
        %s892 = sand.u32 %s31, 1
        %s893 = scalar_lea.sflag [#allocation4], %s892
        %s894 = sand.u32 %s150, 1
        %s895 = smul.addr %s894, 16
        %s896 = scalar_lea.vmem [#allocation10], %s895
        %p897 = pneg %p163
        %p898 = pneg %p160
        %s899 = sand.u32 %s31, 1
        %s900 = scalar_lea.sflag [#allocation4], %s899
        %s901 = sand.u32 %s176, 1
        %s902 = scalar_lea.vmem [#allocation11], %s901
        %p903 = pneg %p189
        %p904 = pneg %p186
        %s905 = sand.u32 %s31, 1
        %s906 = scalar_lea.sflag [#allocation4], %s905
        %s907 = sand.u32 %s202, 1
        %s908 = smul.addr %s907, 16
        %s909 = scalar_lea.vmem [#allocation12], %s908
        %p910 = pneg %p215
        %p911 = pneg %p212
        %s912 = sand.u32 %s31, 1
        %s913 = scalar_lea.sflag [#allocation4], %s912
        %s914 = sand.u32 %s228, 1
        %s915 = scalar_lea.vmem [#allocation13], %s914
        %p916 = pneg %p241
        %p917 = pneg %p238
        %s918 = sand.u32 %s31, 1
        %s919 = scalar_lea.sflag [#allocation4], %s918
        %s920 = sand.u32 %s254, 1
        %s921 = scalar_lea.vmem [#allocation14], %s920
        %p922 = pneg %p267
        %p923 = pneg %p264
        %s924 = sand.u32 %s31, 1
        %s925 = scalar_lea.sflag [#allocation4], %s924
        %s926 = sand.u32 %s280, 1
        %s927 = scalar_lea.vmem [#allocation15], %s926
        %p928 = pneg %p293
        %p929 = pneg %p290
        %s930 = sand.u32 %s31, 1
        %s931 = scalar_lea.sflag [#allocation4], %s930
        %s932 = sand.u32 %s306, 1
        %s933 = smul.addr %s932, 16
        %s934 = scalar_lea.vmem [#allocation16], %s933
        %p935 = pneg %p319
        %p936 = pneg %p316
        %s937 = sand.u32 %s31, 1
        %s938 = scalar_lea.sflag [#allocation4], %s937
        %s939 = sand.u32 %s332, 1
        %s940 = scalar_lea.vmem [#allocation17], %s939
        %p941 = pneg %p345
        %p942 = pneg %p342
        %s943 = sand.u32 %s31, 1
        %s944 = scalar_lea.sflag [#allocation4], %s943
        %s945 = sand.u32 %s358, 1
        %s946 = smul.addr %s945, 16
        %s947 = scalar_lea.vmem [#allocation18], %s946
        %p948 = pneg %p371
        %p949 = pneg %p368
        %s950 = sand.u32 %s31, 1
        %s951 = scalar_lea.sflag [#allocation4], %s950
        %s952 = sand.u32 %s384, 1
        %s953 = scalar_lea.vmem [#allocation19], %s952
        %p954 = pneg %p397
        %p955 = pneg %p394
        %p956 = pneg %p418
        %p957 = pneg %p415
        %p958 = pneg %p439
        %p959 = pneg %p436
        %p960 = pneg %p465
        %p961 = pneg %p462
        %s962 = smul.u32 2, %s35
        %p964 = scmp.eq.s32.totalorder %s36, 0
        // Predicated region
        $region149: #{tpu_custom_call.1} parent=83 // pred_check
          %p965 = pneg %p964
        $region150: #{tpu_custom_call.1} parent=83 // pred_check_branch
          %967 = sbr.rel (%p965) target = $region152
        $region151: #{tpu_custom_call.1} parent=83 // pred_region
          %v968 = vld [vmem:[#allocation3] sm:$0xff]
          %v969 = vld [vmem:[#allocation3 + $0x8] sm:$0xff]
          %v970 = vld [vmem:[#allocation6] sm:$0xff]
          %v971 = vadd.f32 %v968, %v970
          %v972 = vadd.f32 %v969, %v970
          %vm973 = vcmask 261120
          %974 = vst.msk [vmem:[#allocation2] sm:$0xff] %vm973, %v971
          %975 = vst.msk [vmem:[#allocation2 + $0x8] sm:$0xff] %vm973, %v972
        $region152: #{tpu_custom_call.1} parent=83 // pred_fallthru
          _
        %v976 = vld [vmem:[#allocation2] sm:$0xff]
        %v977 = vld [vmem:[#allocation2 + $0x8] sm:$0xff]
        %v978 = vld [vmem:[%s771] sm:$0x1]
        %v979 = vld [vmem:[%s779] sm:$0x1]
        %vm980 = vcmask 261120
        %v981 = vsel %vm980, %v976, 0.0
        %982 = vadd.xlane.f32.xlu0 %v981
        %v983 = vpop.xlane.xlu0 %982
        %v984 = vsel %vm980, %v977, 0.0
        %985 = vadd.xlane.f32.xlu0 %v984
        %v986 = vpop.xlane.xlu0 %985
        %v987 = vrcp.pop 32.0
        %v988 = vmul.f32 %v983, %v987
        %v989 = vmul.f32 %v986, %v987
        %v990 = vsub.f32 %v976, %v988
        %v991 = vsub.f32 %v977, %v989
        %v992 = vmul.f32 %v990, %v990
        %v993 = vmul.f32 %v991, %v991
        %v994 = vsel %vm980, %v992, 0.0
        %995 = vadd.xlane.f32.xlu0 %v994
        %v996 = vpop.xlane.xlu0 %995
        %v997 = vsel %vm980, %v993, 0.0
        %998 = vadd.xlane.f32.xlu0 %v997
        %v999 = vpop.xlane.xlu0 %998
        %v1000 = vmul.f32 %v996, %v987
        %v1001 = vmul.f32 %v999, %v987
        %v1002 = vadd.f32 %v1000, 1e-06
        %v1003 = vadd.f32 %v1001, 1e-06
        %v1004 = vrsqrt.pop %v1002
        %v1005 = vrsqrt.pop %v1003
        %v1006 = vmul.f32 %v990, %v1004
        %v1007 = vmul.f32 %v991, %v1005
        %v1009 = vlaneseq
        %v1010 = vshrl.u32 %v1009, 7
        %v1011 = vsub.s32 0, %v1010
        %v1012 = vrot.slane %v978, %v1011
        %v1014 = vmul.f32 %v1006, %v1012
        %v1015 = vmul.f32 %v1007, %v1012
        %v1017 = vlaneseq
        %v1018 = vshrl.u32 %v1017, 7
        %v1019 = vsub.s32 0, %v1018
        %v1020 = vrot.slane %v979, %v1019
        %v1022 = vadd.f32 %v1014, %v1020
        %v1023 = vadd.f32 %v1015, %v1020
        %v1024 = vpack.c.bf16 %v1023, %v1022
        %v1025 = vld [vmem:[%s788] sm:$0xf]
        %v1026 = vld [vmem:[%s788 + $0x4] sm:$0xf]
        %v1027 = vld [vmem:[%s788 + $0x8] sm:$0xf]
        %v1028 = vld [vmem:[%s788 + $0xc] sm:$0xf]
        %v1029 = vld [vmem:[%s796] sm:$0x1]
        %v1031 = vlaneseq
        %v1032 = vshrl.u32 %v1031, 7
        %v1033 = vsub.s32 0, %v1032
        %v1034 = vrot.slane %v1029, %v1033
        %v1040 = vunpack.c.l.b16 %v1025
        %v1041 = vunpack.c.l.b16 %v1026
        %v1042 = vunpack.c.l.b16 %v1027
        %v1043 = vunpack.c.l.b16 %v1028
        %v1044 = vpack.c.b16 %v1041, %v1040
        %v1045 = vpack.c.b16 %v1043, %v1042
        %v1049 = vsel %vm980, %v1024, 0
        %1051 = vmatprep.subr.bf16.mxu0 0
        %1052 = vmatpush1.bf16.msra.mxu0 %v1044
        %1053 = vmatprep.subr.bf16.mxu0 0
        %1054 = vmatpush1.bf16.msra.mxu0 %v1045
        %1055 = vmatprep.subr.bf16.mxu0 0
        %1056 = vmatpush1.bf16.msra.mxu0 0
        %1057 = vmatprep.subr.bf16.mxu0 0
        %1058 = vmatpush1.bf16.msra.mxu0 0
        %1059 = vmatprep.subr.bf16.mxu0 0
        %1060 = vmatpush1.bf16.msra.mxu0 0
        %1061 = vmatprep.subr.bf16.mxu0 0
        %1062 = vmatpush1.bf16.msra.mxu0 0
        %1063 = vmatprep.subr.bf16.mxu0 0
        %1064 = vmatpush1.bf16.msra.mxu0 0
        %1065 = vmatprep.subr.bf16.mxu0 0
        %1066 = vmatpush1.bf16.msra.mxu0 0
        %1067 = vmatprep.subr.bf16.mxu0 0
        %1068 = vmatpush1.bf16.msra.mxu0 0
        %1069 = vmatprep.subr.bf16.mxu0 0
        %1070 = vmatpush1.bf16.msra.mxu0 0
        %1071 = vmatprep.subr.bf16.mxu0 0
        %1072 = vmatpush1.bf16.msra.mxu0 0
        %1073 = vmatprep.subr.bf16.mxu0 0
        %1074 = vmatpush1.bf16.msra.mxu0 0
        %1075 = vmatprep.subr.bf16.mxu0 0
        %1076 = vmatpush1.bf16.msra.mxu0 0
        %1077 = vmatprep.subr.bf16.mxu0 0
        %1078 = vmatpush1.bf16.msra.mxu0 0
        %1079 = vmatprep.subr.bf16.mxu0 0
        %1080 = vmatpush1.bf16.msra.mxu0 0
        %1081 = vmatprep.subr.bf16.mxu0 0
        %1082 = vmatpush1.bf16.msra.mxu0 0
        %1083 = vmatprep.mubr.bf16.mxu0 0
        %1084 = vmatmul.mubr.bf16.gmra.mrb[0].mxu0 %v1049
        %v1085 = vpop.f32.mrb[0].mxu0
        %v1086 = vadd.f32 %v1034, %v1085
        %v1087 = vpop.f32.mrb[0].mxu0
        %v1088 = vpop.f32.mrb[0].mxu0
        %v1089 = vadd.f32 %v1034, %v1088
        %v1090 = vpop.f32.mrb[0].mxu0
        %1091 = vdwg.mxu0
        %v1092 = vpack.c.bf16 %v1089, %v1086
        %v1094 = vunpack.c.l.b16 %v1092
        %v1095 = vunpack.c.h.b16 %v1092
        %v1096 = vpack.c.b16 %v1094, %v1094
        %v1097 = vpack.c.b16 %v1095, %v1095
        %1098 = vrot.lane.b32.xlu0 %v1096, 96
        %v1099 = vpop.permute.xlu0 %1098
        %vm1100 = vcmask 64512
        %v1102 = vsel %vm1100, %v1096, 0
        %v1105 = vsel %vm1100, %v1099, 0
        %1107 = vmatprep.subr.bf16.mxu0 0
        %1108 = vmatpush1.bf16.xpose.msra.mxu0 %v1105
        %1109 = vmatprep.subr.bf16.mxu0 0
        %1110 = vmatpush1.bf16.xpose.msra.mxu0 0
        %1111 = vmatprep.subr.bf16.mxu0 0
        %1112 = vmatpush1.bf16.xpose.msra.mxu0 0
        %1113 = vmatprep.subr.bf16.mxu0 0
        %1114 = vmatpush1.bf16.xpose.msra.mxu0 0
        %1115 = vmatprep.subr.bf16.mxu0 0
        %1116 = vmatpush1.bf16.xpose.msra.mxu0 0
        %1117 = vmatprep.subr.bf16.mxu0 0
        %1118 = vmatpush1.bf16.xpose.msra.mxu0 0
        %1119 = vmatprep.subr.bf16.mxu0 0
        %1120 = vmatpush1.bf16.xpose.msra.mxu0 0
        %1121 = vmatprep.subr.bf16.mxu0 0
        %1122 = vmatpush1.bf16.xpose.msra.mxu0 0
        %1123 = vmatprep.subr.bf16.mxu0 0
        %1124 = vmatpush1.bf16.xpose.msra.mxu0 0
        %1125 = vmatprep.subr.bf16.mxu0 0
        %1126 = vmatpush1.bf16.xpose.msra.mxu0 0
        %1127 = vmatprep.subr.bf16.mxu0 0
        %1128 = vmatpush1.bf16.xpose.msra.mxu0 0
        %1129 = vmatprep.subr.bf16.mxu0 0
        %1130 = vmatpush1.bf16.xpose.msra.mxu0 0
        %1131 = vmatprep.subr.bf16.mxu0 0
        %1132 = vmatpush1.bf16.xpose.msra.mxu0 0
        %1133 = vmatprep.subr.bf16.mxu0 0
        %1134 = vmatpush1.bf16.xpose.msra.mxu0 0
        %1135 = vmatprep.subr.bf16.mxu0 0
        %1136 = vmatpush1.bf16.xpose.msra.mxu0 0
        %1137 = vmatprep.subr.bf16.mxu0 0
        %1138 = vmatpush1.bf16.xpose.msra.mxu0 0
        %1139 = vmatprep.mubr.bf16.mxu0 0
        %1140 = vmatmul.mubr.bf16.gmra.mrb[0].mxu0 %v1102
        %v1141 = vpop.f32.mrb[0].mxu0
        %v1142 = vadd.f32 0.0, %v1141
        %v1143 = vpop.f32.mrb[0].mxu0
        %v1144 = vpop.f32.mrb[0].mxu0
        %v1145 = vpop.f32.mrb[0].mxu0
        %1146 = vdwg.mxu0
        %1147 = vrot.lane.b32.xlu0 %v1097, 96
        %v1148 = vpop.permute.xlu0 %1147
        %v1150 = vsel %vm1100, %v1097, 0
        %v1153 = vsel %vm1100, %v1148, 0
        %1155 = vmatprep.subr.bf16.mxu0 0
        %1156 = vmatpush1.bf16.xpose.msra.mxu0 %v1153
        %1157 = vmatprep.subr.bf16.mxu0 0
        %1158 = vmatpush1.bf16.xpose.msra.mxu0 0
        %1159 = vmatprep.subr.bf16.mxu0 0
        %1160 = vmatpush1.bf16.xpose.msra.mxu0 0
        %1161 = vmatprep.subr.bf16.mxu0 0
        %1162 = vmatpush1.bf16.xpose.msra.mxu0 0
        %1163 = vmatprep.subr.bf16.mxu0 0
        %1164 = vmatpush1.bf16.xpose.msra.mxu0 0
        %1165 = vmatprep.subr.bf16.mxu0 0
        %1166 = vmatpush1.bf16.xpose.msra.mxu0 0
        %1167 = vmatprep.subr.bf16.mxu0 0
        %1168 = vmatpush1.bf16.xpose.msra.mxu0 0
        %1169 = vmatprep.subr.bf16.mxu0 0
        %1170 = vmatpush1.bf16.xpose.msra.mxu0 0
        %1171 = vmatprep.subr.bf16.mxu0 0
        %1172 = vmatpush1.bf16.xpose.msra.mxu0 0
        %1173 = vmatprep.subr.bf16.mxu0 0
        %1174 = vmatpush1.bf16.xpose.msra.mxu0 0
        %1175 = vmatprep.subr.bf16.mxu0 0
        %1176 = vmatpush1.bf16.xpose.msra.mxu0 0
        %1177 = vmatprep.subr.bf16.mxu0 0
        %1178 = vmatpush1.bf16.xpose.msra.mxu0 0
        %1179 = vmatprep.subr.bf16.mxu0 0
        %1180 = vmatpush1.bf16.xpose.msra.mxu0 0
        %1181 = vmatprep.subr.bf16.mxu0 0
        %1182 = vmatpush1.bf16.xpose.msra.mxu0 0
        %1183 = vmatprep.subr.bf16.mxu0 0
        %1184 = vmatpush1.bf16.xpose.msra.mxu0 0
        %1185 = vmatprep.subr.bf16.mxu0 0
        %1186 = vmatpush1.bf16.xpose.msra.mxu0 0
        %1187 = vmatprep.mubr.bf16.mxu0 0
        %1188 = vmatmul.mubr.bf16.gmra.mrb[0].mxu0 %v1150
        %v1189 = vpop.f32.mrb[0].mxu0
        %v1190 = vadd.f32 0.0, %v1189
        %v1191 = vpop.f32.mrb[0].mxu0
        %v1192 = vpop.f32.mrb[0].mxu0
        %v1193 = vpop.f32.mrb[0].mxu0
        %1194 = vdwg.mxu0
        %v1195 = vsel %vm1100, %v1142, -inf
        %1196 = vmax.xlane.f32.xlu0 %v1195
        %v1197 = vpop.xlane.xlu0 %1196
        %v1198 = vsel %vm1100, %v1190, -inf
        %1199 = vmax.xlane.f32.xlu0 %v1198
        %v1200 = vpop.xlane.xlu0 %1199
        %v1201 = vsub.f32 %v1142, %v1197
        %v1202 = vsub.f32 %v1190, %v1200
        %v1203 = vmul.f32 %v1201, 1.442695
        %v1204 = vpow.pop %v1203
        %v1205 = vmul.f32 %v1202, 1.442695
        %v1206 = vpow.pop %v1205
        %v1207 = vsel %vm1100, %v1204, 0.0
        %1208 = vadd.xlane.f32.xlu0 %v1207
        %v1209 = vpop.xlane.xlu0 %1208
        %v1210 = vsel %vm1100, %v1206, 0.0
        %1211 = vadd.xlane.f32.xlu0 %v1210
        %v1212 = vpop.xlane.xlu0 %1211
        %v1213 = vrcp.pop %v1209
        %v1214 = vrcp.pop %v1212
        %v1215 = vmul.f32 %v1204, %v1213
        %v1216 = vmul.f32 %v1206, %v1214
        %v1217 = vpack.c.bf16 %v1215, %v1215
        %v1218 = vpack.c.bf16 %v1216, %v1216
        %1219 = vrot.lane.b32.xlu0 %v1096, 64
        %v1220 = vpop.permute.xlu0 %1219
        %v1222 = vsel %vm1100, %v1217, 0
        %vm1224 = vcmask 1043456
        %v1226 = vsel %vm1224, %v1220, 0
        %1228 = vmatprep.subr.bf16.mxu0 0
        %1229 = vmatpush1.bf16.msra.mxu0 %v1226
        %1230 = vmatprep.subr.bf16.mxu0 0
        %1231 = vmatpush1.bf16.msra.mxu0 0
        %1232 = vmatprep.subr.bf16.mxu0 0
        %1233 = vmatpush1.bf16.msra.mxu0 0
        %1234 = vmatprep.subr.bf16.mxu0 0
        %1235 = vmatpush1.bf16.msra.mxu0 0
        %1236 = vmatprep.subr.bf16.mxu0 0
        %1237 = vmatpush1.bf16.msra.mxu0 0
        %1238 = vmatprep.subr.bf16.mxu0 0
        %1239 = vmatpush1.bf16.msra.mxu0 0
        %1240 = vmatprep.subr.bf16.mxu0 0
        %1241 = vmatpush1.bf16.msra.mxu0 0
        %1242 = vmatprep.subr.bf16.mxu0 0
        %1243 = vmatpush1.bf16.msra.mxu0 0
        %1244 = vmatprep.subr.bf16.mxu0 0
        %1245 = vmatpush1.bf16.msra.mxu0 0
        %1246 = vmatprep.subr.bf16.mxu0 0
        %1247 = vmatpush1.bf16.msra.mxu0 0
        %1248 = vmatprep.subr.bf16.mxu0 0
        %1249 = vmatpush1.bf16.msra.mxu0 0
        %1250 = vmatprep.subr.bf16.mxu0 0
        %1251 = vmatpush1.bf16.msra.mxu0 0
        %1252 = vmatprep.subr.bf16.mxu0 0
        %1253 = vmatpush1.bf16.msra.mxu0 0
        %1254 = vmatprep.subr.bf16.mxu0 0
        %1255 = vmatpush1.bf16.msra.mxu0 0
        %1256 = vmatprep.subr.bf16.mxu0 0
        %1257 = vmatpush1.bf16.msra.mxu0 0
        %1258 = vmatprep.subr.bf16.mxu0 0
        %1259 = vmatpush1.bf16.msra.mxu0 0
        %1260 = vmatprep.mubr.bf16.mxu0 0
        %1261 = vmatmul.mubr.bf16.gmra.mrb[0].mxu0 %v1222
        %v1262 = vpop.f32.mrb[0].mxu0
        %v1263 = vadd.f32 0.0, %v1262
        %v1264 = vpop.f32.mrb[0].mxu0
        %v1265 = vpop.f32.mrb[0].mxu0
        %v1266 = vpop.f32.mrb[0].mxu0
        %1267 = vdwg.mxu0
        %1268 = vrot.lane.b32.xlu0 %v1097, 64
        %v1269 = vpop.permute.xlu0 %1268
        %v1271 = vsel %vm1100, %v1218, 0
        %v1274 = vsel %vm1224, %v1269, 0
        %1276 = vmatprep.subr.bf16.mxu0 0
        %1277 = vmatpush1.bf16.msra.mxu0 %v1274
        %1278 = vmatprep.subr.bf16.mxu0 0
        %1279 = vmatpush1.bf16.msra.mxu0 0
        %1280 = vmatprep.subr.bf16.mxu0 0
        %1281 = vmatpush1.bf16.msra.mxu0 0
        %1282 = vmatprep.subr.bf16.mxu0 0
        %1283 = vmatpush1.bf16.msra.mxu0 0
        %1284 = vmatprep.subr.bf16.mxu0 0
        %1285 = vmatpush1.bf16.msra.mxu0 0
        %1286 = vmatprep.subr.bf16.mxu0 0
        %1287 = vmatpush1.bf16.msra.mxu0 0
        %1288 = vmatprep.subr.bf16.mxu0 0
        %1289 = vmatpush1.bf16.msra.mxu0 0
        %1290 = vmatprep.subr.bf16.mxu0 0
        %1291 = vmatpush1.bf16.msra.mxu0 0
        %1292 = vmatprep.subr.bf16.mxu0 0
        %1293 = vmatpush1.bf16.msra.mxu0 0
        %1294 = vmatprep.subr.bf16.mxu0 0
        %1295 = vmatpush1.bf16.msra.mxu0 0
        %1296 = vmatprep.subr.bf16.mxu0 0
        %1297 = vmatpush1.bf16.msra.mxu0 0
        %1298 = vmatprep.subr.bf16.mxu0 0
        %1299 = vmatpush1.bf16.msra.mxu0 0
        %1300 = vmatprep.subr.bf16.mxu0 0
        %1301 = vmatpush1.bf16.msra.mxu0 0
        %1302 = vmatprep.subr.bf16.mxu0 0
        %1303 = vmatpush1.bf16.msra.mxu0 0
        %1304 = vmatprep.subr.bf16.mxu0 0
        %1305 = vmatpush1.bf16.msra.mxu0 0
        %1306 = vmatprep.subr.bf16.mxu0 0
        %1307 = vmatpush1.bf16.msra.mxu0 0
        %1308 = vmatprep.mubr.bf16.mxu0 0
        %1309 = vmatmul.mubr.bf16.gmra.mrb[0].mxu0 %v1271
        %v1310 = vpop.f32.mrb[0].mxu0
        %v1311 = vadd.f32 0.0, %v1310
        %v1312 = vpop.f32.mrb[0].mxu0
        %v1313 = vpop.f32.mrb[0].mxu0
        %v1314 = vpop.f32.mrb[0].mxu0
        %1315 = vdwg.mxu0
        %1316 = vrot.lane.b32.xlu0 %v1096, 120
        %v1317 = vpop.permute.xlu0 %1316
        %1318 = vrot.lane.b32.xlu0 %v1096, 88
        %v1319 = vpop.permute.xlu0 %1318
        %v1321 = vsel %vm1100, %v1317, 0
        %v1324 = vsel %vm1100, %v1319, 0
        %1326 = vmatprep.subr.bf16.mxu0 0
        %1327 = vmatpush1.bf16.xpose.msra.mxu0 %v1324
        %1328 = vmatprep.subr.bf16.mxu0 0
        %1329 = vmatpush1.bf16.xpose.msra.mxu0 0
        %1330 = vmatprep.subr.bf16.mxu0 0
        %1331 = vmatpush1.bf16.xpose.msra.mxu0 0
        %1332 = vmatprep.subr.bf16.mxu0 0
        %1333 = vmatpush1.bf16.xpose.msra.mxu0 0
        %1334 = vmatprep.subr.bf16.mxu0 0
        %1335 = vmatpush1.bf16.xpose.msra.mxu0 0
        %1336 = vmatprep.subr.bf16.mxu0 0
        %1337 = vmatpush1.bf16.xpose.msra.mxu0 0
        %1338 = vmatprep.subr.bf16.mxu0 0
        %1339 = vmatpush1.bf16.xpose.msra.mxu0 0
        %1340 = vmatprep.subr.bf16.mxu0 0
        %1341 = vmatpush1.bf16.xpose.msra.mxu0 0
        %1342 = vmatprep.subr.bf16.mxu0 0
        %1343 = vmatpush1.bf16.xpose.msra.mxu0 0
        %1344 = vmatprep.subr.bf16.mxu0 0
        %1345 = vmatpush1.bf16.xpose.msra.mxu0 0
        %1346 = vmatprep.subr.bf16.mxu0 0
        %1347 = vmatpush1.bf16.xpose.msra.mxu0 0
        %1348 = vmatprep.subr.bf16.mxu0 0
        %1349 = vmatpush1.bf16.xpose.msra.mxu0 0
        %1350 = vmatprep.subr.bf16.mxu0 0
        %1351 = vmatpush1.bf16.xpose.msra.mxu0 0
        %1352 = vmatprep.subr.bf16.mxu0 0
        %1353 = vmatpush1.bf16.xpose.msra.mxu0 0
        %1354 = vmatprep.subr.bf16.mxu0 0
        %1355 = vmatpush1.bf16.xpose.msra.mxu0 0
        %1356 = vmatprep.subr.bf16.mxu0 0
        %1357 = vmatpush1.bf16.xpose.msra.mxu0 0
        %1358 = vmatprep.mubr.bf16.mxu0 0
        %1359 = vmatmul.mubr.bf16.gmra.mrb[0].mxu0 %v1321
        %v1360 = vpop.f32.mrb[0].mxu0
        %v1361 = vadd.f32 0.0, %v1360
        %v1362 = vpop.f32.mrb[0].mxu0
        %v1363 = vpop.f32.mrb[0].mxu0
        %v1364 = vpop.f32.mrb[0].mxu0
        %1365 = vdwg.mxu0
        %1366 = vrot.lane.b32.xlu0 %v1097, 120
        %v1367 = vpop.permute.xlu0 %1366
        %1368 = vrot.lane.b32.xlu0 %v1097, 88
        %v1369 = vpop.permute.xlu0 %1368
        %v1371 = vsel %vm1100, %v1367, 0
        %v1374 = vsel %vm1100, %v1369, 0
        %1376 = vmatprep.subr.bf16.mxu0 0
        %1377 = vmatpush1.bf16.xpose.msra.mxu0 %v1374
        %1378 = vmatprep.subr.bf16.mxu0 0
        %1379 = vmatpush1.bf16.xpose.msra.mxu0 0
        %1380 = vmatprep.subr.bf16.mxu0 0
        %1381 = vmatpush1.bf16.xpose.msra.mxu0 0
        %1382 = vmatprep.subr.bf16.mxu0 0
        %1383 = vmatpush1.bf16.xpose.msra.mxu0 0
        %1384 = vmatprep.subr.bf16.mxu0 0
        %1385 = vmatpush1.bf16.xpose.msra.mxu0 0
        %1386 = vmatprep.subr.bf16.mxu0 0
        %1387 = vmatpush1.bf16.xpose.msra.mxu0 0
        %1388 = vmatprep.subr.bf16.mxu0 0
        %1389 = vmatpush1.bf16.xpose.msra.mxu0 0
        %1390 = vmatprep.subr.bf16.mxu0 0
        %1391 = vmatpush1.bf16.xpose.msra.mxu0 0
        %1392 = vmatprep.subr.bf16.mxu0 0
        %1393 = vmatpush1.bf16.xpose.msra.mxu0 0
        %1394 = vmatprep.subr.bf16.mxu0 0
        %1395 = vmatpush1.bf16.xpose.msra.mxu0 0
        %1396 = vmatprep.subr.bf16.mxu0 0
        %1397 = vmatpush1.bf16.xpose.msra.mxu0 0
        %1398 = vmatprep.subr.bf16.mxu0 0
        %1399 = vmatpush1.bf16.xpose.msra.mxu0 0
        %1400 = vmatprep.subr.bf16.mxu0 0
        %1401 = vmatpush1.bf16.xpose.msra.mxu0 0
        %1402 = vmatprep.subr.bf16.mxu0 0
        %1403 = vmatpush1.bf16.xpose.msra.mxu0 0
        %1404 = vmatprep.subr.bf16.mxu0 0
        %1405 = vmatpush1.bf16.xpose.msra.mxu0 0
        %1406 = vmatprep.subr.bf16.mxu0 0
        %1407 = vmatpush1.bf16.xpose.msra.mxu0 0
        %1408 = vmatprep.mubr.bf16.mxu0 0
        %1409 = vmatmul.mubr.bf16.gmra.mrb[0].mxu0 %v1371
        %v1410 = vpop.f32.mrb[0].mxu0
        %v1411 = vadd.f32 0.0, %v1410
        %v1412 = vpop.f32.mrb[0].mxu0
        %v1413 = vpop.f32.mrb[0].mxu0
        %v1414 = vpop.f32.mrb[0].mxu0
        %1415 = vdwg.mxu0
        %v1416 = vsel %vm1100, %v1361, -inf
        %1417 = vmax.xlane.f32.xlu0 %v1416
        %v1418 = vpop.xlane.xlu0 %1417
        %v1419 = vsel %vm1100, %v1411, -inf
        %1420 = vmax.xlane.f32.xlu0 %v1419
        %v1421 = vpop.xlane.xlu0 %1420
        %v1422 = vsub.f32 %v1361, %v1418
        %v1423 = vsub.f32 %v1411, %v1421
        %v1424 = vmul.f32 %v1422, 1.442695
        %v1425 = vpow.pop %v1424
        %v1426 = vmul.f32 %v1423, 1.442695
        %v1427 = vpow.pop %v1426
        %v1428 = vsel %vm1100, %v1425, 0.0
        %1429 = vadd.xlane.f32.xlu0 %v1428
        %v1430 = vpop.xlane.xlu0 %1429
        %v1431 = vsel %vm1100, %v1427, 0.0
        %1432 = vadd.xlane.f32.xlu0 %v1431
        %v1433 = vpop.xlane.xlu0 %1432
        %v1434 = vrcp.pop %v1430
        %v1435 = vrcp.pop %v1433
        %v1436 = vmul.f32 %v1425, %v1434
        %v1437 = vmul.f32 %v1427, %v1435
        %v1438 = vpack.c.bf16 %v1436, %v1436
        %v1439 = vpack.c.bf16 %v1437, %v1437
        %1440 = vrot.lane.b32.xlu0 %v1096, 56
        %v1441 = vpop.permute.xlu0 %1440
        %v1443 = vsel %vm1100, %v1438, 0
        %v1446 = vsel %vm1224, %v1441, 0
        %1448 = vmatprep.subr.bf16.mxu0 0
        %1449 = vmatpush1.bf16.msra.mxu0 %v1446
        %1450 = vmatprep.subr.bf16.mxu0 0
        %1451 = vmatpush1.bf16.msra.mxu0 0
        %1452 = vmatprep.subr.bf16.mxu0 0
        %1453 = vmatpush1.bf16.msra.mxu0 0
        %1454 = vmatprep.subr.bf16.mxu0 0
        %1455 = vmatpush1.bf16.msra.mxu0 0
        %1456 = vmatprep.subr.bf16.mxu0 0
        %1457 = vmatpush1.bf16.msra.mxu0 0
        %1458 = vmatprep.subr.bf16.mxu0 0
        %1459 = vmatpush1.bf16.msra.mxu0 0
        %1460 = vmatprep.subr.bf16.mxu0 0
        %1461 = vmatpush1.bf16.msra.mxu0 0
        %1462 = vmatprep.subr.bf16.mxu0 0
        %1463 = vmatpush1.bf16.msra.mxu0 0
        %1464 = vmatprep.subr.bf16.mxu0 0
        %1465 = vmatpush1.bf16.msra.mxu0 0
        %1466 = vmatprep.subr.bf16.mxu0 0
        %1467 = vmatpush1.bf16.msra.mxu0 0
        %1468 = vmatprep.subr.bf16.mxu0 0
        %1469 = vmatpush1.bf16.msra.mxu0 0
        %1470 = vmatprep.subr.bf16.mxu0 0
        %1471 = vmatpush1.bf16.msra.mxu0 0
        %1472 = vmatprep.subr.bf16.mxu0 0
        %1473 = vmatpush1.bf16.msra.mxu0 0
        %1474 = vmatprep.subr.bf16.mxu0 0
        %1475 = vmatpush1.bf16.msra.mxu0 0
        %1476 = vmatprep.subr.bf16.mxu0 0
        %1477 = vmatpush1.bf16.msra.mxu0 0
        %1478 = vmatprep.subr.bf16.mxu0 0
        %1479 = vmatpush1.bf16.msra.mxu0 0
        %1480 = vmatprep.mubr.bf16.mxu0 0
        %1481 = vmatmul.mubr.bf16.gmra.mrb[0].mxu0 %v1443
        %v1482 = vpop.f32.mrb[0].mxu0
        %v1483 = vadd.f32 0.0, %v1482
        %v1484 = vpop.f32.mrb[0].mxu0
        %v1485 = vpop.f32.mrb[0].mxu0
        %v1486 = vpop.f32.mrb[0].mxu0
        %1487 = vdwg.mxu0
        %1488 = vrot.lane.b32.xlu0 %v1097, 56
        %v1489 = vpop.permute.xlu0 %1488
        %v1491 = vsel %vm1100, %v1439, 0
        %v1494 = vsel %vm1224, %v1489, 0
        %1496 = vmatprep.subr.bf16.mxu0 0
        %1497 = vmatpush1.bf16.msra.mxu0 %v1494
        %1498 = vmatprep.subr.bf16.mxu0 0
        %1499 = vmatpush1.bf16.msra.mxu0 0
        %1500 = vmatprep.subr.bf16.mxu0 0
        %1501 = vmatpush1.bf16.msra.mxu0 0
        %1502 = vmatprep.subr.bf16.mxu0 0
        %1503 = vmatpush1.bf16.msra.mxu0 0
        %1504 = vmatprep.subr.bf16.mxu0 0
        %1505 = vmatpush1.bf16.msra.mxu0 0
        %1506 = vmatprep.subr.bf16.mxu0 0
        %1507 = vmatpush1.bf16.msra.mxu0 0
        %1508 = vmatprep.subr.bf16.mxu0 0
        %1509 = vmatpush1.bf16.msra.mxu0 0
        %1510 = vmatprep.subr.bf16.mxu0 0
        %1511 = vmatpush1.bf16.msra.mxu0 0
        %1512 = vmatprep.subr.bf16.mxu0 0
        %1513 = vmatpush1.bf16.msra.mxu0 0
        %1514 = vmatprep.subr.bf16.mxu0 0
        %1515 = vmatpush1.bf16.msra.mxu0 0
        %1516 = vmatprep.subr.bf16.mxu0 0
        %1517 = vmatpush1.bf16.msra.mxu0 0
        %1518 = vmatprep.subr.bf16.mxu0 0
        %1519 = vmatpush1.bf16.msra.mxu0 0
        %1520 = vmatprep.subr.bf16.mxu0 0
        %1521 = vmatpush1.bf16.msra.mxu0 0
        %1522 = vmatprep.subr.bf16.mxu0 0
        %1523 = vmatpush1.bf16.msra.mxu0 0
        %1524 = vmatprep.subr.bf16.mxu0 0
        %1525 = vmatpush1.bf16.msra.mxu0 0
        %1526 = vmatprep.subr.bf16.mxu0 0
        %1527 = vmatpush1.bf16.msra.mxu0 0
        %1528 = vmatprep.mubr.bf16.mxu0 0
        %1529 = vmatmul.mubr.bf16.gmra.mrb[0].mxu0 %v1491
        %v1530 = vpop.f32.mrb[0].mxu0
        %v1531 = vadd.f32 0.0, %v1530
        %v1532 = vpop.f32.mrb[0].mxu0
        %v1533 = vpop.f32.mrb[0].mxu0
        %v1534 = vpop.f32.mrb[0].mxu0
        %1535 = vdwg.mxu0
        %1536 = vrot.lane.b32.xlu0 %v1096, 112
        %v1537 = vpop.permute.xlu0 %1536
        %1538 = vrot.lane.b32.xlu0 %v1096, 80
        %v1539 = vpop.permute.xlu0 %1538
        %v1541 = vsel %vm1100, %v1537, 0
        %v1544 = vsel %vm1100, %v1539, 0
        %1546 = vmatprep.subr.bf16.mxu0 0
        %1547 = vmatpush1.bf16.xpose.msra.mxu0 %v1544
        %1548 = vmatprep.subr.bf16.mxu0 0
        %1549 = vmatpush1.bf16.xpose.msra.mxu0 0
        %1550 = vmatprep.subr.bf16.mxu0 0
        %1551 = vmatpush1.bf16.xpose.msra.mxu0 0
        %1552 = vmatprep.subr.bf16.mxu0 0
        %1553 = vmatpush1.bf16.xpose.msra.mxu0 0
        %1554 = vmatprep.subr.bf16.mxu0 0
        %1555 = vmatpush1.bf16.xpose.msra.mxu0 0
        %1556 = vmatprep.subr.bf16.mxu0 0
        %1557 = vmatpush1.bf16.xpose.msra.mxu0 0
        %1558 = vmatprep.subr.bf16.mxu0 0
        %1559 = vmatpush1.bf16.xpose.msra.mxu0 0
        %1560 = vmatprep.subr.bf16.mxu0 0
        %1561 = vmatpush1.bf16.xpose.msra.mxu0 0
        %1562 = vmatprep.subr.bf16.mxu0 0
        %1563 = vmatpush1.bf16.xpose.msra.mxu0 0
        %1564 = vmatprep.subr.bf16.mxu0 0
        %1565 = vmatpush1.bf16.xpose.msra.mxu0 0
        %1566 = vmatprep.subr.bf16.mxu0 0
        %1567 = vmatpush1.bf16.xpose.msra.mxu0 0
        %1568 = vmatprep.subr.bf16.mxu0 0
        %1569 = vmatpush1.bf16.xpose.msra.mxu0 0
        %1570 = vmatprep.subr.bf16.mxu0 0
        %1571 = vmatpush1.bf16.xpose.msra.mxu0 0
        %1572 = vmatprep.subr.bf16.mxu0 0
        %1573 = vmatpush1.bf16.xpose.msra.mxu0 0
        %1574 = vmatprep.subr.bf16.mxu0 0
        %1575 = vmatpush1.bf16.xpose.msra.mxu0 0
        %1576 = vmatprep.subr.bf16.mxu0 0
        %1577 = vmatpush1.bf16.xpose.msra.mxu0 0
        %1578 = vmatprep.mubr.bf16.mxu0 0
        %1579 = vmatmul.mubr.bf16.gmra.mrb[0].mxu0 %v1541
        %v1580 = vpop.f32.mrb[0].mxu0
        %v1581 = vadd.f32 0.0, %v1580
        %v1582 = vpop.f32.mrb[0].mxu0
        %v1583 = vpop.f32.mrb[0].mxu0
        %v1584 = vpop.f32.mrb[0].mxu0
        %1585 = vdwg.mxu0
        %1586 = vrot.lane.b32.xlu0 %v1097, 112
        %v1587 = vpop.permute.xlu0 %1586
        %1588 = vrot.lane.b32.xlu0 %v1097, 80
        %v1589 = vpop.permute.xlu0 %1588
        %v1591 = vsel %vm1100, %v1587, 0
        %v1594 = vsel %vm1100, %v1589, 0
        %1596 = vmatprep.subr.bf16.mxu0 0
        %1597 = vmatpush1.bf16.xpose.msra.mxu0 %v1594
        %1598 = vmatprep.subr.bf16.mxu0 0
        %1599 = vmatpush1.bf16.xpose.msra.mxu0 0
        %1600 = vmatprep.subr.bf16.mxu0 0
        %1601 = vmatpush1.bf16.xpose.msra.mxu0 0
        %1602 = vmatprep.subr.bf16.mxu0 0
        %1603 = vmatpush1.bf16.xpose.msra.mxu0 0
        %1604 = vmatprep.subr.bf16.mxu0 0
        %1605 = vmatpush1.bf16.xpose.msra.mxu0 0
        %1606 = vmatprep.subr.bf16.mxu0 0
        %1607 = vmatpush1.bf16.xpose.msra.mxu0 0
        %1608 = vmatprep.subr.bf16.mxu0 0
        %1609 = vmatpush1.bf16.xpose.msra.mxu0 0
        %1610 = vmatprep.subr.bf16.mxu0 0
        %1611 = vmatpush1.bf16.xpose.msra.mxu0 0
        %1612 = vmatprep.subr.bf16.mxu0 0
        %1613 = vmatpush1.bf16.xpose.msra.mxu0 0
        %1614 = vmatprep.subr.bf16.mxu0 0
        %1615 = vmatpush1.bf16.xpose.msra.mxu0 0
        %1616 = vmatprep.subr.bf16.mxu0 0
        %1617 = vmatpush1.bf16.xpose.msra.mxu0 0
        %1618 = vmatprep.subr.bf16.mxu0 0
        %1619 = vmatpush1.bf16.xpose.msra.mxu0 0
        %1620 = vmatprep.subr.bf16.mxu0 0
        %1621 = vmatpush1.bf16.xpose.msra.mxu0 0
        %1622 = vmatprep.subr.bf16.mxu0 0
        %1623 = vmatpush1.bf16.xpose.msra.mxu0 0
        %1624 = vmatprep.subr.bf16.mxu0 0
        %1625 = vmatpush1.bf16.xpose.msra.mxu0 0
        %1626 = vmatprep.subr.bf16.mxu0 0
        %1627 = vmatpush1.bf16.xpose.msra.mxu0 0
        %1628 = vmatprep.mubr.bf16.mxu0 0
        %1629 = vmatmul.mubr.bf16.gmra.mrb[0].mxu0 %v1591
        %v1630 = vpop.f32.mrb[0].mxu0
        %v1631 = vadd.f32 0.0, %v1630
        %v1632 = vpop.f32.mrb[0].mxu0
        %v1633 = vpop.f32.mrb[0].mxu0
        %v1634 = vpop.f32.mrb[0].mxu0
        %1635 = vdwg.mxu0
        %v1636 = vsel %vm1100, %v1581, -inf
        %1637 = vmax.xlane.f32.xlu0 %v1636
        %v1638 = vpop.xlane.xlu0 %1637
        %v1639 = vsel %vm1100, %v1631, -inf
        %1640 = vmax.xlane.f32.xlu0 %v1639
        %v1641 = vpop.xlane.xlu0 %1640
        %v1642 = vsub.f32 %v1581, %v1638
        %v1643 = vsub.f32 %v1631, %v1641
        %v1644 = vmul.f32 %v1642, 1.442695
        %v1645 = vpow.pop %v1644
        %v1646 = vmul.f32 %v1643, 1.442695
        %v1647 = vpow.pop %v1646
        %v1648 = vsel %vm1100, %v1645, 0.0
        %1649 = vadd.xlane.f32.xlu0 %v1648
        %v1650 = vpop.xlane.xlu0 %1649
        %v1651 = vsel %vm1100, %v1647, 0.0
        %1652 = vadd.xlane.f32.xlu0 %v1651
        %v1653 = vpop.xlane.xlu0 %1652
        %v1654 = vrcp.pop %v1650
        %v1655 = vrcp.pop %v1653
        %v1656 = vmul.f32 %v1645, %v1654
        %v1657 = vmul.f32 %v1647, %v1655
        %v1658 = vpack.c.bf16 %v1656, %v1656
        %v1659 = vpack.c.bf16 %v1657, %v1657
        %1660 = vrot.lane.b32.xlu0 %v1096, 48
        %v1661 = vpop.permute.xlu0 %1660
        %v1663 = vsel %vm1100, %v1658, 0
        %v1666 = vsel %vm1224, %v1661, 0
        %1668 = vmatprep.subr.bf16.mxu0 0
        %1669 = vmatpush1.bf16.msra.mxu0 %v1666
        %1670 = vmatprep.subr.bf16.mxu0 0
        %1671 = vmatpush1.bf16.msra.mxu0 0
        %1672 = vmatprep.subr.bf16.mxu0 0
        %1673 = vmatpush1.bf16.msra.mxu0 0
        %1674 = vmatprep.subr.bf16.mxu0 0
        %1675 = vmatpush1.bf16.msra.mxu0 0
        %1676 = vmatprep.subr.bf16.mxu0 0
        %1677 = vmatpush1.bf16.msra.mxu0 0
        %1678 = vmatprep.subr.bf16.mxu0 0
        %1679 = vmatpush1.bf16.msra.mxu0 0
        %1680 = vmatprep.subr.bf16.mxu0 0
        %1681 = vmatpush1.bf16.msra.mxu0 0
        %1682 = vmatprep.subr.bf16.mxu0 0
        %1683 = vmatpush1.bf16.msra.mxu0 0
        %1684 = vmatprep.subr.bf16.mxu0 0
        %1685 = vmatpush1.bf16.msra.mxu0 0
        %1686 = vmatprep.subr.bf16.mxu0 0
        %1687 = vmatpush1.bf16.msra.mxu0 0
        %1688 = vmatprep.subr.bf16.mxu0 0
        %1689 = vmatpush1.bf16.msra.mxu0 0
        %1690 = vmatprep.subr.bf16.mxu0 0
        %1691 = vmatpush1.bf16.msra.mxu0 0
        %1692 = vmatprep.subr.bf16.mxu0 0
        %1693 = vmatpush1.bf16.msra.mxu0 0
        %1694 = vmatprep.subr.bf16.mxu0 0
        %1695 = vmatpush1.bf16.msra.mxu0 0
        %1696 = vmatprep.subr.bf16.mxu0 0
        %1697 = vmatpush1.bf16.msra.mxu0 0
        %1698 = vmatprep.subr.bf16.mxu0 0
        %1699 = vmatpush1.bf16.msra.mxu0 0
        %1700 = vmatprep.mubr.bf16.mxu0 0
        %1701 = vmatmul.mubr.bf16.gmra.mrb[0].mxu0 %v1663
        %v1702 = vpop.f32.mrb[0].mxu0
        %v1703 = vadd.f32 0.0, %v1702
        %v1704 = vpop.f32.mrb[0].mxu0
        %v1705 = vpop.f32.mrb[0].mxu0
        %v1706 = vpop.f32.mrb[0].mxu0
        %1707 = vdwg.mxu0
        %1708 = vrot.lane.b32.xlu0 %v1097, 48
        %v1709 = vpop.permute.xlu0 %1708
        %v1711 = vsel %vm1100, %v1659, 0
        %v1714 = vsel %vm1224, %v1709, 0
        %1716 = vmatprep.subr.bf16.mxu0 0
        %1717 = vmatpush1.bf16.msra.mxu0 %v1714
        %1718 = vmatprep.subr.bf16.mxu0 0
        %1719 = vmatpush1.bf16.msra.mxu0 0
        %1720 = vmatprep.subr.bf16.mxu0 0
        %1721 = vmatpush1.bf16.msra.mxu0 0
        %1722 = vmatprep.subr.bf16.mxu0 0
        %1723 = vmatpush1.bf16.msra.mxu0 0
        %1724 = vmatprep.subr.bf16.mxu0 0
        %1725 = vmatpush1.bf16.msra.mxu0 0
        %1726 = vmatprep.subr.bf16.mxu0 0
        %1727 = vmatpush1.bf16.msra.mxu0 0
        %1728 = vmatprep.subr.bf16.mxu0 0
        %1729 = vmatpush1.bf16.msra.mxu0 0
        %1730 = vmatprep.subr.bf16.mxu0 0
        %1731 = vmatpush1.bf16.msra.mxu0 0
        %1732 = vmatprep.subr.bf16.mxu0 0
        %1733 = vmatpush1.bf16.msra.mxu0 0
        %1734 = vmatprep.subr.bf16.mxu0 0
        %1735 = vmatpush1.bf16.msra.mxu0 0
        %1736 = vmatprep.subr.bf16.mxu0 0
        %1737 = vmatpush1.bf16.msra.mxu0 0
        %1738 = vmatprep.subr.bf16.mxu0 0
        %1739 = vmatpush1.bf16.msra.mxu0 0
        %1740 = vmatprep.subr.bf16.mxu0 0
        %1741 = vmatpush1.bf16.msra.mxu0 0
        %1742 = vmatprep.subr.bf16.mxu0 0
        %1743 = vmatpush1.bf16.msra.mxu0 0
        %1744 = vmatprep.subr.bf16.mxu0 0
        %1745 = vmatpush1.bf16.msra.mxu0 0
        %1746 = vmatprep.subr.bf16.mxu0 0
        %1747 = vmatpush1.bf16.msra.mxu0 0
        %1748 = vmatprep.mubr.bf16.mxu0 0
        %1749 = vmatmul.mubr.bf16.gmra.mrb[0].mxu0 %v1711
        %v1750 = vpop.f32.mrb[0].mxu0
        %v1751 = vadd.f32 0.0, %v1750
        %v1752 = vpop.f32.mrb[0].mxu0
        %v1753 = vpop.f32.mrb[0].mxu0
        %v1754 = vpop.f32.mrb[0].mxu0
        %1755 = vdwg.mxu0
        %1756 = vrot.lane.b32.xlu0 %v1096, 104
        %v1757 = vpop.permute.xlu0 %1756
        %1758 = vrot.lane.b32.xlu0 %v1096, 72
        %v1759 = vpop.permute.xlu0 %1758
        %v1761 = vsel %vm1100, %v1757, 0
        %v1764 = vsel %vm1100, %v1759, 0
        %1766 = vmatprep.subr.bf16.mxu0 0
        %1767 = vmatpush1.bf16.xpose.msra.mxu0 %v1764
        %1768 = vmatprep.subr.bf16.mxu0 0
        %1769 = vmatpush1.bf16.xpose.msra.mxu0 0
        %1770 = vmatprep.subr.bf16.mxu0 0
        %1771 = vmatpush1.bf16.xpose.msra.mxu0 0
        %1772 = vmatprep.subr.bf16.mxu0 0
        %1773 = vmatpush1.bf16.xpose.msra.mxu0 0
        %1774 = vmatprep.subr.bf16.mxu0 0
        %1775 = vmatpush1.bf16.xpose.msra.mxu0 0
        %1776 = vmatprep.subr.bf16.mxu0 0
        %1777 = vmatpush1.bf16.xpose.msra.mxu0 0
        %1778 = vmatprep.subr.bf16.mxu0 0
        %1779 = vmatpush1.bf16.xpose.msra.mxu0 0
        %1780 = vmatprep.subr.bf16.mxu0 0
        %1781 = vmatpush1.bf16.xpose.msra.mxu0 0
        %1782 = vmatprep.subr.bf16.mxu0 0
        %1783 = vmatpush1.bf16.xpose.msra.mxu0 0
        %1784 = vmatprep.subr.bf16.mxu0 0
        %1785 = vmatpush1.bf16.xpose.msra.mxu0 0
        %1786 = vmatprep.subr.bf16.mxu0 0
        %1787 = vmatpush1.bf16.xpose.msra.mxu0 0
        %1788 = vmatprep.subr.bf16.mxu0 0
        %1789 = vmatpush1.bf16.xpose.msra.mxu0 0
        %1790 = vmatprep.subr.bf16.mxu0 0
        %1791 = vmatpush1.bf16.xpose.msra.mxu0 0
        %1792 = vmatprep.subr.bf16.mxu0 0
        %1793 = vmatpush1.bf16.xpose.msra.mxu0 0
        %1794 = vmatprep.subr.bf16.mxu0 0
        %1795 = vmatpush1.bf16.xpose.msra.mxu0 0
        %1796 = vmatprep.subr.bf16.mxu0 0
        %1797 = vmatpush1.bf16.xpose.msra.mxu0 0
        %1798 = vmatprep.mubr.bf16.mxu0 0
        %1799 = vmatmul.mubr.bf16.gmra.mrb[0].mxu0 %v1761
        %v1800 = vpop.f32.mrb[0].mxu0
        %v1801 = vadd.f32 0.0, %v1800
        %v1802 = vpop.f32.mrb[0].mxu0
        %v1803 = vpop.f32.mrb[0].mxu0
        %v1804 = vpop.f32.mrb[0].mxu0
        %1805 = vdwg.mxu0
        %1806 = vrot.lane.b32.xlu0 %v1097, 104
        %v1807 = vpop.permute.xlu0 %1806
        %1808 = vrot.lane.b32.xlu0 %v1097, 72
        %v1809 = vpop.permute.xlu0 %1808
        %v1811 = vsel %vm1100, %v1807, 0
        %v1814 = vsel %vm1100, %v1809, 0
        %1816 = vmatprep.subr.bf16.mxu0 0
        %1817 = vmatpush1.bf16.xpose.msra.mxu0 %v1814
        %1818 = vmatprep.subr.bf16.mxu0 0
        %1819 = vmatpush1.bf16.xpose.msra.mxu0 0
        %1820 = vmatprep.subr.bf16.mxu0 0
        %1821 = vmatpush1.bf16.xpose.msra.mxu0 0
        %1822 = vmatprep.subr.bf16.mxu0 0
        %1823 = vmatpush1.bf16.xpose.msra.mxu0 0
        %1824 = vmatprep.subr.bf16.mxu0 0
        %1825 = vmatpush1.bf16.xpose.msra.mxu0 0
        %1826 = vmatprep.subr.bf16.mxu0 0
        %1827 = vmatpush1.bf16.xpose.msra.mxu0 0
        %1828 = vmatprep.subr.bf16.mxu0 0
        %1829 = vmatpush1.bf16.xpose.msra.mxu0 0
        %1830 = vmatprep.subr.bf16.mxu0 0
        %1831 = vmatpush1.bf16.xpose.msra.mxu0 0
        %1832 = vmatprep.subr.bf16.mxu0 0
        %1833 = vmatpush1.bf16.xpose.msra.mxu0 0
        %1834 = vmatprep.subr.bf16.mxu0 0
        %1835 = vmatpush1.bf16.xpose.msra.mxu0 0
        %1836 = vmatprep.subr.bf16.mxu0 0
        %1837 = vmatpush1.bf16.xpose.msra.mxu0 0
        %1838 = vmatprep.subr.bf16.mxu0 0
        %1839 = vmatpush1.bf16.xpose.msra.mxu0 0
        %1840 = vmatprep.subr.bf16.mxu0 0
        %1841 = vmatpush1.bf16.xpose.msra.mxu0 0
        %1842 = vmatprep.subr.bf16.mxu0 0
        %1843 = vmatpush1.bf16.xpose.msra.mxu0 0
        %1844 = vmatprep.subr.bf16.mxu0 0
        %1845 = vmatpush1.bf16.xpose.msra.mxu0 0
        %1846 = vmatprep.subr.bf16.mxu0 0
        %1847 = vmatpush1.bf16.xpose.msra.mxu0 0
        %1848 = vmatprep.mubr.bf16.mxu0 0
        %1849 = vmatmul.mubr.bf16.gmra.mrb[0].mxu0 %v1811
        %v1850 = vpop.f32.mrb[0].mxu0
        %v1851 = vadd.f32 0.0, %v1850
        %v1852 = vpop.f32.mrb[0].mxu0
        %v1853 = vpop.f32.mrb[0].mxu0
        %v1854 = vpop.f32.mrb[0].mxu0
        %1855 = vdwg.mxu0
        %v1856 = vsel %vm1100, %v1801, -inf
        %1857 = vmax.xlane.f32.xlu0 %v1856
        %v1858 = vpop.xlane.xlu0 %1857
        %v1859 = vsel %vm1100, %v1851, -inf
        %1860 = vmax.xlane.f32.xlu0 %v1859
        %v1861 = vpop.xlane.xlu0 %1860
        %v1862 = vsub.f32 %v1801, %v1858
        %v1863 = vsub.f32 %v1851, %v1861
        %v1864 = vmul.f32 %v1862, 1.442695
        %v1865 = vpow.pop %v1864
        %v1866 = vmul.f32 %v1863, 1.442695
        %v1867 = vpow.pop %v1866
        %v1868 = vsel %vm1100, %v1865, 0.0
        %1869 = vadd.xlane.f32.xlu0 %v1868
        %v1870 = vpop.xlane.xlu0 %1869
        %v1871 = vsel %vm1100, %v1867, 0.0
        %1872 = vadd.xlane.f32.xlu0 %v1871
        %v1873 = vpop.xlane.xlu0 %1872
        %v1874 = vrcp.pop %v1870
        %v1875 = vrcp.pop %v1873
        %v1876 = vmul.f32 %v1865, %v1874
        %v1877 = vmul.f32 %v1867, %v1875
        %v1878 = vpack.c.bf16 %v1876, %v1876
        %v1879 = vpack.c.bf16 %v1877, %v1877
        %1880 = vrot.lane.b32.xlu0 %v1096, 40
        %v1881 = vpop.permute.xlu0 %1880
        %v1883 = vsel %vm1100, %v1878, 0
        %v1886 = vsel %vm1224, %v1881, 0
        %1888 = vmatprep.subr.bf16.mxu0 0
        %1889 = vmatpush1.bf16.msra.mxu0 %v1886
        %1890 = vmatprep.subr.bf16.mxu0 0
        %1891 = vmatpush1.bf16.msra.mxu0 0
        %1892 = vmatprep.subr.bf16.mxu0 0
        %1893 = vmatpush1.bf16.msra.mxu0 0
        %1894 = vmatprep.subr.bf16.mxu0 0
        %1895 = vmatpush1.bf16.msra.mxu0 0
        %1896 = vmatprep.subr.bf16.mxu0 0
        %1897 = vmatpush1.bf16.msra.mxu0 0
        %1898 = vmatprep.subr.bf16.mxu0 0
        %1899 = vmatpush1.bf16.msra.mxu0 0
        %1900 = vmatprep.subr.bf16.mxu0 0
        %1901 = vmatpush1.bf16.msra.mxu0 0
        %1902 = vmatprep.subr.bf16.mxu0 0
        %1903 = vmatpush1.bf16.msra.mxu0 0
        %1904 = vmatprep.subr.bf16.mxu0 0
        %1905 = vmatpush1.bf16.msra.mxu0 0
        %1906 = vmatprep.subr.bf16.mxu0 0
        %1907 = vmatpush1.bf16.msra.mxu0 0
        %1908 = vmatprep.subr.bf16.mxu0 0
        %1909 = vmatpush1.bf16.msra.mxu0 0
        %1910 = vmatprep.subr.bf16.mxu0 0
        %1911 = vmatpush1.bf16.msra.mxu0 0
        %1912 = vmatprep.subr.bf16.mxu0 0
        %1913 = vmatpush1.bf16.msra.mxu0 0
        %1914 = vmatprep.subr.bf16.mxu0 0
        %1915 = vmatpush1.bf16.msra.mxu0 0
        %1916 = vmatprep.subr.bf16.mxu0 0
        %1917 = vmatpush1.bf16.msra.mxu0 0
        %1918 = vmatprep.subr.bf16.mxu0 0
        %1919 = vmatpush1.bf16.msra.mxu0 0
        %1920 = vmatprep.mubr.bf16.mxu0 0
        %1921 = vmatmul.mubr.bf16.gmra.mrb[0].mxu0 %v1883
        %v1922 = vpop.f32.mrb[0].mxu0
        %v1923 = vadd.f32 0.0, %v1922
        %v1924 = vpop.f32.mrb[0].mxu0
        %v1925 = vpop.f32.mrb[0].mxu0
        %v1926 = vpop.f32.mrb[0].mxu0
        %1927 = vdwg.mxu0
        %1928 = vrot.lane.b32.xlu0 %v1097, 40
        %v1929 = vpop.permute.xlu0 %1928
        %v1931 = vsel %vm1100, %v1879, 0
        %v1934 = vsel %vm1224, %v1929, 0
        %1936 = vmatprep.subr.bf16.mxu0 0
        %1937 = vmatpush1.bf16.msra.mxu0 %v1934
        %1938 = vmatprep.subr.bf16.mxu0 0
        %1939 = vmatpush1.bf16.msra.mxu0 0
        %1940 = vmatprep.subr.bf16.mxu0 0
        %1941 = vmatpush1.bf16.msra.mxu0 0
        %1942 = vmatprep.subr.bf16.mxu0 0
        %1943 = vmatpush1.bf16.msra.mxu0 0
        %1944 = vmatprep.subr.bf16.mxu0 0
        %1945 = vmatpush1.bf16.msra.mxu0 0
        %1946 = vmatprep.subr.bf16.mxu0 0
        %1947 = vmatpush1.bf16.msra.mxu0 0
        %1948 = vmatprep.subr.bf16.mxu0 0
        %1949 = vmatpush1.bf16.msra.mxu0 0
        %1950 = vmatprep.subr.bf16.mxu0 0
        %1951 = vmatpush1.bf16.msra.mxu0 0
        %1952 = vmatprep.subr.bf16.mxu0 0
        %1953 = vmatpush1.bf16.msra.mxu0 0
        %1954 = vmatprep.subr.bf16.mxu0 0
        %1955 = vmatpush1.bf16.msra.mxu0 0
        %1956 = vmatprep.subr.bf16.mxu0 0
        %1957 = vmatpush1.bf16.msra.mxu0 0
        %1958 = vmatprep.subr.bf16.mxu0 0
        %1959 = vmatpush1.bf16.msra.mxu0 0
        %1960 = vmatprep.subr.bf16.mxu0 0
        %1961 = vmatpush1.bf16.msra.mxu0 0
        %1962 = vmatprep.subr.bf16.mxu0 0
        %1963 = vmatpush1.bf16.msra.mxu0 0
        %1964 = vmatprep.subr.bf16.mxu0 0
        %1965 = vmatpush1.bf16.msra.mxu0 0
        %1966 = vmatprep.subr.bf16.mxu0 0
        %1967 = vmatpush1.bf16.msra.mxu0 0
        %1968 = vmatprep.mubr.bf16.mxu0 0
        %1969 = vmatmul.mubr.bf16.gmra.mrb[0].mxu0 %v1931
        %v1970 = vpop.f32.mrb[0].mxu0
        %v1971 = vadd.f32 0.0, %v1970
        %v1972 = vpop.f32.mrb[0].mxu0
        %v1973 = vpop.f32.mrb[0].mxu0
        %v1974 = vpop.f32.mrb[0].mxu0
        %1975 = vdwg.mxu0
        %1978 = vrot.lane.b32.xlu0 %v1483, 8
        %v1979 = vpop.permute.xlu0 %1978
        %1980 = vrot.lane.b32.xlu0 %v1531, 8
        %v1981 = vpop.permute.xlu0 %1980
        %1986 = vrot.lane.b32.xlu0 %v1703, 16
        %v1987 = vpop.permute.xlu0 %1986
        %1988 = vrot.lane.b32.xlu0 %v1751, 16
        %v1989 = vpop.permute.xlu0 %1988
        %1994 = vrot.lane.b32.xlu0 %v1923, 24
        %v1995 = vpop.permute.xlu0 %1994
        %1996 = vrot.lane.b32.xlu0 %v1971, 24
        %v1997 = vpop.permute.xlu0 %1996
        %v2000 = vsel %vm1100, %v1263, %v1979
        %v2001 = vsel %vm1100, %v1311, %v1981
        %vm2002 = vcmask 130048
        %v2003 = vsel %vm2002, %v2000, %v1987
        %v2004 = vsel %vm2002, %v2001, %v1989
        %vm2005 = vcmask 195584
        %v2006 = vsel %vm2005, %v2003, %v1995
        %v2007 = vsel %vm2005, %v2004, %v1997
        %v2008 = vpack.c.bf16 %v2007, %v2006
        %v2009 = vld [vmem:[%s805] sm:$0xf]
        %v2010 = vld [vmem:[%s805 + $0x4] sm:$0xf]
        %v2011 = vld [vmem:[%s805 + $0x8] sm:$0xf]
        %v2012 = vld [vmem:[%s805 + $0xc] sm:$0xf]
        %v2013 = vld [vmem:[%s813] sm:$0x1]
        %v2015 = vlaneseq
        %v2016 = vshrl.u32 %v2015, 7
        %v2017 = vsub.s32 0, %v2016
        %v2018 = vrot.slane %v2013, %v2017
        %v2024 = vunpack.c.l.b16 %v2009
        %v2025 = vunpack.c.l.b16 %v2010
        %v2026 = vunpack.c.l.b16 %v2011
        %v2027 = vunpack.c.l.b16 %v2012
        %v2028 = vpack.c.b16 %v2025, %v2024
        %v2029 = vpack.c.b16 %v2027, %v2026
        %v2033 = vsel %vm980, %v2008, 0
        %2035 = vmatprep.subr.bf16.mxu0 0
        %2036 = vmatpush1.bf16.msra.mxu0 %v2028
        %2037 = vmatprep.subr.bf16.mxu0 0
        %2038 = vmatpush1.bf16.msra.mxu0 %v2029
        %2039 = vmatprep.subr.bf16.mxu0 0
        %2040 = vmatpush1.bf16.msra.mxu0 0
        %2041 = vmatprep.subr.bf16.mxu0 0
        %2042 = vmatpush1.bf16.msra.mxu0 0
        %2043 = vmatprep.subr.bf16.mxu0 0
        %2044 = vmatpush1.bf16.msra.mxu0 0
        %2045 = vmatprep.subr.bf16.mxu0 0
        %2046 = vmatpush1.bf16.msra.mxu0 0
        %2047 = vmatprep.subr.bf16.mxu0 0
        %2048 = vmatpush1.bf16.msra.mxu0 0
        %2049 = vmatprep.subr.bf16.mxu0 0
        %2050 = vmatpush1.bf16.msra.mxu0 0
        %2051 = vmatprep.subr.bf16.mxu0 0
        %2052 = vmatpush1.bf16.msra.mxu0 0
        %2053 = vmatprep.subr.bf16.mxu0 0
        %2054 = vmatpush1.bf16.msra.mxu0 0
        %2055 = vmatprep.subr.bf16.mxu0 0
        %2056 = vmatpush1.bf16.msra.mxu0 0
        %2057 = vmatprep.subr.bf16.mxu0 0
        %2058 = vmatpush1.bf16.msra.mxu0 0
        %2059 = vmatprep.subr.bf16.mxu0 0
        %2060 = vmatpush1.bf16.msra.mxu0 0
        %2061 = vmatprep.subr.bf16.mxu0 0
        %2062 = vmatpush1.bf16.msra.mxu0 0
        %2063 = vmatprep.subr.bf16.mxu0 0
        %2064 = vmatpush1.bf16.msra.mxu0 0
        %2065 = vmatprep.subr.bf16.mxu0 0
        %2066 = vmatpush1.bf16.msra.mxu0 0
        %2067 = vmatprep.mubr.bf16.mxu0 0
        %2068 = vmatmul.mubr.bf16.gmra.mrb[0].mxu0 %v2033
        %v2069 = vpop.f32.mrb[0].mxu0
        %v2070 = vadd.f32 %v2018, %v2069
        %v2071 = vpop.f32.mrb[0].mxu0
        %v2072 = vpop.f32.mrb[0].mxu0
        %v2073 = vadd.f32 %v2018, %v2072
        %v2074 = vpop.f32.mrb[0].mxu0
        %2075 = vdwg.mxu0
        %v2076 = vadd.f32 %v976, %v2070
        %v2077 = vadd.f32 %v977, %v2073
        %v2078 = vld [vmem:[%s821] sm:$0x1]
        %v2079 = vld [vmem:[%s829] sm:$0x1]
        %v2080 = vsel %vm980, %v2076, 0.0
        %2081 = vadd.xlane.f32.xlu0 %v2080
        %v2082 = vpop.xlane.xlu0 %2081
        %v2083 = vsel %vm980, %v2077, 0.0
        %2084 = vadd.xlane.f32.xlu0 %v2083
        %v2085 = vpop.xlane.xlu0 %2084
        %v2086 = vmul.f32 %v2082, %v987
        %v2087 = vmul.f32 %v2085, %v987
        %v2088 = vsub.f32 %v2076, %v2086
        %v2089 = vsub.f32 %v2077, %v2087
        %v2090 = vmul.f32 %v2088, %v2088
        %v2091 = vmul.f32 %v2089, %v2089
        %v2092 = vsel %vm980, %v2090, 0.0
        %2093 = vadd.xlane.f32.xlu0 %v2092
        %v2094 = vpop.xlane.xlu0 %2093
        %v2095 = vsel %vm980, %v2091, 0.0
        %2096 = vadd.xlane.f32.xlu0 %v2095
        %v2097 = vpop.xlane.xlu0 %2096
        %v2098 = vmul.f32 %v2094, %v987
        %v2099 = vmul.f32 %v2097, %v987
        %v2100 = vadd.f32 %v2098, 1e-06
        %v2101 = vadd.f32 %v2099, 1e-06
        %v2102 = vrsqrt.pop %v2100
        %v2103 = vrsqrt.pop %v2101
        %v2104 = vmul.f32 %v2088, %v2102
        %v2105 = vmul.f32 %v2089, %v2103
        %v2107 = vlaneseq
        %v2108 = vshrl.u32 %v2107, 7
        %v2109 = vsub.s32 0, %v2108
        %v2110 = vrot.slane %v2078, %v2109
        %v2112 = vmul.f32 %v2104, %v2110
        %v2113 = vmul.f32 %v2105, %v2110
        %v2115 = vlaneseq
        %v2116 = vshrl.u32 %v2115, 7
        %v2117 = vsub.s32 0, %v2116
        %v2118 = vrot.slane %v2079, %v2117
        %v2120 = vadd.f32 %v2112, %v2118
        %v2121 = vadd.f32 %v2113, %v2118
        %v2122 = vpack.c.bf16 %v2121, %v2120
        %v2123 = vld [vmem:[%s838] sm:$0xf]
        %v2124 = vld [vmem:[%s838 + $0x4] sm:$0xf]
        %v2125 = vld [vmem:[%s838 + $0x8] sm:$0xf]
        %v2126 = vld [vmem:[%s838 + $0xc] sm:$0xf]
        %v2127 = vld [vmem:[%s846] sm:$0x1]
        %v2129 = vlaneseq
        %v2130 = vshrl.u32 %v2129, 7
        %v2131 = vsub.s32 0, %v2130
        %v2132 = vrot.slane %v2127, %v2131
        %v2138 = vunpack.c.l.b16 %v2123
        %v2139 = vunpack.c.l.b16 %v2124
        %v2140 = vunpack.c.l.b16 %v2125
        %v2141 = vunpack.c.l.b16 %v2126
        %v2142 = vpack.c.b16 %v2139, %v2138
        %v2143 = vpack.c.b16 %v2141, %v2140
        %v2147 = vsel %vm980, %v2122, 0
        %2149 = vmatprep.subr.bf16.mxu0 0
        %2150 = vmatpush1.bf16.msra.mxu0 %v2142
        %2151 = vmatprep.subr.bf16.mxu0 0
        %2152 = vmatpush1.bf16.msra.mxu0 %v2143
        %2153 = vmatprep.subr.bf16.mxu0 0
        %2154 = vmatpush1.bf16.msra.mxu0 0
        %2155 = vmatprep.subr.bf16.mxu0 0
        %2156 = vmatpush1.bf16.msra.mxu0 0
        %2157 = vmatprep.subr.bf16.mxu0 0
        %2158 = vmatpush1.bf16.msra.mxu0 0
        %2159 = vmatprep.subr.bf16.mxu0 0
        %2160 = vmatpush1.bf16.msra.mxu0 0
        %2161 = vmatprep.subr.bf16.mxu0 0
        %2162 = vmatpush1.bf16.msra.mxu0 0
        %2163 = vmatprep.subr.bf16.mxu0 0
        %2164 = vmatpush1.bf16.msra.mxu0 0
        %2165 = vmatprep.subr.bf16.mxu0 0
        %2166 = vmatpush1.bf16.msra.mxu0 0
        %2167 = vmatprep.subr.bf16.mxu0 0
        %2168 = vmatpush1.bf16.msra.mxu0 0
        %2169 = vmatprep.subr.bf16.mxu0 0
        %2170 = vmatpush1.bf16.msra.mxu0 0
        %2171 = vmatprep.subr.bf16.mxu0 0
        %2172 = vmatpush1.bf16.msra.mxu0 0
        %2173 = vmatprep.subr.bf16.mxu0 0
        %2174 = vmatpush1.bf16.msra.mxu0 0
        %2175 = vmatprep.subr.bf16.mxu0 0
        %2176 = vmatpush1.bf16.msra.mxu0 0
        %2177 = vmatprep.subr.bf16.mxu0 0
        %2178 = vmatpush1.bf16.msra.mxu0 0
        %2179 = vmatprep.subr.bf16.mxu0 0
        %2180 = vmatpush1.bf16.msra.mxu0 0
        %2181 = vmatprep.mubr.bf16.mxu0 0
        %2182 = vmatmul.mubr.bf16.gmra.mrb[0].mxu0 %v2147
        %v2183 = vpop.f32.mrb[0].mxu0
        %v2184 = vadd.f32 %v2132, %v2183
        %v2185 = vpop.f32.mrb[0].mxu0
        %v2186 = vpop.f32.mrb[0].mxu0
        %v2187 = vadd.f32 %v2132, %v2186
        %v2188 = vpop.f32.mrb[0].mxu0
        %2189 = vdwg.mxu0
        %v2190 = vmul.f32 %v2184, 0.5
        %v2191 = vmul.f32 %v2187, 0.5
        %v2192 = vmul.f32 %v2184, 0.70710677
        %v2193 = vmul.f32 %v2187, 0.70710677
        %v2194 = verf.f32.pop %v2192
        %v2195 = verf.f32.pop %v2193
        %v2196 = vadd.f32 %v2194, 1.0
        %v2197 = vadd.f32 %v2195, 1.0
        %v2198 = vmul.f32 %v2190, %v2196
        %v2199 = vmul.f32 %v2191, %v2197
        %v2200 = vpack.c.bf16 %v2199, %v2198
        %v2201 = vld [vmem:[%s855] sm:$0xf]
        %v2202 = vld [vmem:[%s855 + $0x4] sm:$0xf]
        %v2203 = vld [vmem:[%s855 + $0x8] sm:$0xf]
        %v2204 = vld [vmem:[%s855 + $0xc] sm:$0xf]
        %v2205 = vld [vmem:[%s863] sm:$0x1]
        %v2207 = vlaneseq
        %v2208 = vshrl.u32 %v2207, 7
        %v2209 = vsub.s32 0, %v2208
        %v2210 = vrot.slane %v2205, %v2209
        %v2216 = vunpack.c.l.b16 %v2201
        %v2217 = vunpack.c.l.b16 %v2202
        %v2218 = vunpack.c.l.b16 %v2203
        %v2219 = vunpack.c.l.b16 %v2204
        %v2220 = vpack.c.b16 %v2217, %v2216
        %v2221 = vpack.c.b16 %v2219, %v2218
        %v2225 = vsel %vm980, %v2200, 0
        %2227 = vmatprep.subr.bf16.mxu0 0
        %2228 = vmatpush1.bf16.msra.mxu0 %v2220
        %2229 = vmatprep.subr.bf16.mxu0 0
        %2230 = vmatpush1.bf16.msra.mxu0 %v2221
        %2231 = vmatprep.subr.bf16.mxu0 0
        %2232 = vmatpush1.bf16.msra.mxu0 0
        %2233 = vmatprep.subr.bf16.mxu0 0
        %2234 = vmatpush1.bf16.msra.mxu0 0
        %2235 = vmatprep.subr.bf16.mxu0 0
        %2236 = vmatpush1.bf16.msra.mxu0 0
        %2237 = vmatprep.subr.bf16.mxu0 0
        %2238 = vmatpush1.bf16.msra.mxu0 0
        %2239 = vmatprep.subr.bf16.mxu0 0
        %2240 = vmatpush1.bf16.msra.mxu0 0
        %2241 = vmatprep.subr.bf16.mxu0 0
        %2242 = vmatpush1.bf16.msra.mxu0 0
        %2243 = vmatprep.subr.bf16.mxu0 0
        %2244 = vmatpush1.bf16.msra.mxu0 0
        %2245 = vmatprep.subr.bf16.mxu0 0
        %2246 = vmatpush1.bf16.msra.mxu0 0
        %2247 = vmatprep.subr.bf16.mxu0 0
        %2248 = vmatpush1.bf16.msra.mxu0 0
        %2249 = vmatprep.subr.bf16.mxu0 0
        %2250 = vmatpush1.bf16.msra.mxu0 0
        %2251 = vmatprep.subr.bf16.mxu0 0
        %2252 = vmatpush1.bf16.msra.mxu0 0
        %2253 = vmatprep.subr.bf16.mxu0 0
        %2254 = vmatpush1.bf16.msra.mxu0 0
        %2255 = vmatprep.subr.bf16.mxu0 0
        %2256 = vmatpush1.bf16.msra.mxu0 0
        %2257 = vmatprep.subr.bf16.mxu0 0
        %2258 = vmatpush1.bf16.msra.mxu0 0
        %2259 = vmatprep.mubr.bf16.mxu0 0
        %2260 = vmatmul.mubr.bf16.gmra.mrb[0].mxu0 %v2225
        %v2261 = vpop.f32.mrb[0].mxu0
        %v2262 = vadd.f32 %v2210, %v2261
        %v2263 = vpop.f32.mrb[0].mxu0
        %v2264 = vpop.f32.mrb[0].mxu0
        %v2265 = vadd.f32 %v2210, %v2264
        %v2266 = vpop.f32.mrb[0].mxu0
        %2267 = vdwg.mxu0
        %v2268 = vadd.f32 %v2076, %v2262
        %v2269 = vadd.f32 %v2077, %v2265
        %2270 = vst.msk [vmem:[#allocation2] sm:$0xff] %vm980, %v2268
        %2271 = vst.msk [vmem:[#allocation2 + $0x8] sm:$0xff] %vm980, %v2269
        %p2272 = scmp.eq.s32.totalorder %s36, 1
        // Predicated region
        $region153: #{tpu_custom_call.1} parent=83 // pred_check
          %p2273 = pneg %p2272
        $region154: #{tpu_custom_call.1} parent=83 // pred_check_branch
          %2275 = sbr.rel (%p2273) target = $region156
        $region155: #{tpu_custom_call.1} parent=83 // pred_region
          %v2276 = vld [vmem:[#allocation20] sm:$0x1]
          %v2277 = vld [vmem:[#allocation21] sm:$0x1]
          %v2278 = vsel %vm980, %v2268, 0.0
          %2279 = vadd.xlane.f32.xlu0 %v2278
          %v2280 = vpop.xlane.xlu0 %2279
          %v2281 = vsel %vm980, %v2269, 0.0
          %2282 = vadd.xlane.f32.xlu0 %v2281
          %v2283 = vpop.xlane.xlu0 %2282
          %v2284 = vmul.f32 %v2280, %v987
          %v2285 = vmul.f32 %v2283, %v987
          %v2286 = vsub.f32 %v2268, %v2284
          %v2287 = vsub.f32 %v2269, %v2285
          %v2288 = vmul.f32 %v2286, %v2286
          %v2289 = vmul.f32 %v2287, %v2287
          %v2290 = vsel %vm980, %v2288, 0.0
          %2291 = vadd.xlane.f32.xlu0 %v2290
          %v2292 = vpop.xlane.xlu0 %2291
          %v2293 = vsel %vm980, %v2289, 0.0
          %2294 = vadd.xlane.f32.xlu0 %v2293
          %v2295 = vpop.xlane.xlu0 %2294
          %v2296 = vmul.f32 %v2292, %v987
          %v2297 = vmul.f32 %v2295, %v987
          %v2298 = vadd.f32 %v2296, 1e-06
          %v2299 = vadd.f32 %v2297, 1e-06
          %v2300 = vrsqrt.pop %v2298
          %v2301 = vrsqrt.pop %v2299
          %v2302 = vmul.f32 %v2286, %v2300
          %v2303 = vmul.f32 %v2287, %v2301
          %v2305 = vlaneseq
          %v2306 = vshrl.u32 %v2305, 7
          %v2307 = vsub.s32 0, %v2306
          %v2308 = vrot.slane %v2276, %v2307
          %v2310 = vmul.f32 %v2302, %v2308
          %v2311 = vmul.f32 %v2303, %v2308
          %v2313 = vlaneseq
          %v2314 = vshrl.u32 %v2313, 7
          %v2315 = vsub.s32 0, %v2314
          %v2316 = vrot.slane %v2277, %v2315
          %v2318 = vadd.f32 %v2310, %v2316
          %v2319 = vadd.f32 %v2311, %v2316
          %v2320 = vsel %vm980, %v2318, 0.0
          %v2321 = vrot.slane %v2320, 4
          %v2322 = vadd.f32 %v2320, %v2321
          %v2323 = vrot.slane %v2322, 2
          %v2324 = vadd.f32 %v2322, %v2323
          %v2325 = vrot.slane %v2324, 1
          %v2326 = vadd.f32 %v2324, %v2325
          %v2327 = vsel %vm980, %v2319, 0.0
          %v2328 = vrot.slane %v2327, 4
          %v2329 = vadd.f32 %v2327, %v2328
          %v2330 = vrot.slane %v2329, 2
          %v2331 = vadd.f32 %v2329, %v2330
          %v2332 = vrot.slane %v2331, 1
          %v2333 = vadd.f32 %v2331, %v2332
          %v2334 = vrcp.pop 8.0
          %v2335 = vmul.f32 %v2326, %v2334
          %v2336 = vmul.f32 %v2333, %v2334
          %vm2339 = vcmask 1041409
          %v2340 = vsel %vm2339, %v2336, %v2335
          %vm2342 = vcmask 254976
          %2343 = vst.msk [vmem:[#allocation23] sm:$0x3] %vm2342, %v2340
        $region156: #{tpu_custom_call.1} parent=83 // pred_fallthru
          _
        // Predicated region
        $region157: #{tpu_custom_call.1} parent=83 // pred_check
          %p2344 = pneg %p462
        $region158: #{tpu_custom_call.1} parent=83 // pred_check_branch
          %2346 = sbr.rel (%p2344) target = $region160
        $region159: #{tpu_custom_call.1} parent=83 // pred_region
          %s2348 = ssub.s32 32, 32
          %2349 = vsyncadd [#allocation5], %s2348
          %s2350 = smul.addr %s35, 32
          %s2351 = scalar_lea.hbm %s16, %s2350
          %s2353 = sshll.u32 [#allocation23], 4
          %s2354 = int_to_ptr.vmem [resolvable:$true] %s2353
          %2356 = dma.vmem_to_hbm [thread:$0]  %s2354, 32, %s2351, [#allocation5]
        $region160: #{tpu_custom_call.1} parent=83 // pred_fallthru
          _
        // Predicated region
        $region161: #{tpu_custom_call.1} parent=83 // pred_check
          %p2357 = pneg %p462
        $region162: #{tpu_custom_call.1} parent=83 // pred_check_branch
          %2359 = sbr.rel (%p2357) target = $region164
        $region163: #{tpu_custom_call.1} parent=83 // pred_region
          %2360 = dma.done [#allocation5], 32
        $region164: #{tpu_custom_call.1} parent=83 // pred_fallthru
          _
      $region84: #{tpu_custom_call.1} parent=5 // pred_fallthru
        _
      %p2361 = scmp.le.s32.totalorder 2, %s26
      // Predicated region
      $region165: #{tpu_custom_call.1} parent=5 // pred_check
        %p2362 = pneg %p2361
      $region166: #{tpu_custom_call.1} parent=5 // pred_check_branch
        %2364 = sbr.rel (%p2362) target = $region168
      $region167: #{tpu_custom_call.1} parent=5 // pred_region
        %s2365 = ssub.s32 %s26, 2
      $region168: #{tpu_custom_call.1} parent=5 // pred_fallthru
        _
    $region6: #{tpu_custom_call.1} parent=1 // loop_footer
      %s30 = sadd.s32 1, %s26
    $region7: #{tpu_custom_call.1} parent=1 // loop_footer_branch
      %25 = sbr.rel target = $region3
    $region8: #{tpu_custom_call.1} parent=1 // loop_exit
      _
    %2366 = vsyncpa [#allocation4], 1
    %s2367 = scalar_lea.sflag [#allocation4], 1
    %2368 = vsyncpa %s2367, 1
    %2369 = vsyncpa [#allocation7], 1
    %2370 = vsyncpa [#allocation22], 1
    %2371 = vsyncpa [#allocation5], 1
    %s2372 = scalar_lea.sflag [#allocation5], 1
    %2373 = vsyncpa %s2372, 1

</llo_original>
